<compile_context>
chip_gen: v7x
topology: tpu7x:2x2x1
jax: 0.10.0
libtpu: 0.0.40
codegen_flags: <defaults>
</compile_context>

<pallas_src>
import jax
import jax.numpy as jnp
from jax.experimental import pallas as pl
from jax.experimental.pallas import tpu as pltpu

STATE_DIM = 17
ACTION_DIM = 6
D_IN = STATE_DIM + ACTION_DIM
HIDDEN = 256


def _critic_kernel(sa_ref,
                   w_in, b_in,
                   w2, b2, w3, b3,
                   w6, b6, w7, b7,
                   w4r, w8r, b_out,
                   q_ref):
    # ---- Layer 1, both heads fused: sa @ [W1 | W5] (single small-K matmul).
    h = jnp.dot(sa_ref[...], w_in[...],
                preferred_element_type=jnp.float32) + b_in[...]
    h = jnp.maximum(h, 0.0).astype(jnp.bfloat16)          # [TB, 2*HIDDEN] bf16
    h1 = h[:, :HIDDEN]                                     # lane-aligned slices
    h2 = h[:, HIDDEN:]

    def hidden_bf16(x, w_ref, b_ref):
        y = jnp.dot(x, w_ref[...], preferred_element_type=jnp.float32) + b_ref[...]
        return jnp.maximum(y, 0.0).astype(jnp.bfloat16)

    def hidden_f32(x, w_ref, b_ref):
        y = jnp.dot(x, w_ref[...], preferred_element_type=jnp.float32) + b_ref[...]
        return jnp.maximum(y, 0.0)

    # Q1 head hidden layers (last one kept f32 for the final VPU reduction).
    h1 = hidden_bf16(h1, w2, b2)
    h1 = hidden_f32(h1, w3, b3)
    # Q2 head hidden layers.
    h2 = hidden_bf16(h2, w6, b6)
    h2 = hidden_f32(h2, w7, b7)

    # Final 256 -> 1 layers as VPU multiply + lane (XLU) reduction instead of
    # N=1 MXU matmuls; single [TB, 2] store for both heads, fused bias.
    q1 = jnp.sum(h1 * w4r[...], axis=-1, keepdims=True)
    q2 = jnp.sum(h2 * w8r[...], axis=-1, keepdims=True)
    q_ref[...] = (jnp.concatenate([q1, q2], axis=-1) + b_out[...]).astype(q_ref.dtype)


def _pick_tile(batch, max_tile=2048):
    """Row tile: multiples of 128, >=2 balanced grid steps when batch allows."""
    if batch <= 256:
        return 128
    n_steps = max(2, pl.cdiv(batch, max_tile))
    if n_steps % 2:                      # even step count -> balanced on v7x's 2 TCs
        n_steps += 1
    tb = pl.cdiv(pl.cdiv(batch, n_steps), 128) * 128
    return max(128, min(max_tile, tb))


def prepare_params(params):
    """Fuse / narrow raw per-layer params for the kernel.

    Raw layout: w{i} is [in, out] f32 (transposed from PyTorch nn.Linear),
    b{i} is [1, out] f32.
    """
    bf16 = jnp.bfloat16
    f32 = jnp.float32
    # Fused, un-split layer-1 of both heads: [D_IN, 2*HIDDEN].
    w_in = jnp.concatenate([params["w1"], params["w5"]], axis=1).astype(bf16)
    b_in = jnp.concatenate([params["b1"], params["b5"]], axis=1).astype(f32)
    # Fused output bias for both heads: [1, 2].
    b_out = jnp.concatenate([params["b4"], params["b8"]], axis=1).astype(f32)
    return dict(
        w_in=w_in, b_in=b_in,
        w2=params["w2"].astype(bf16), b2=params["b2"].astype(f32),
        w3=params["w3"].astype(bf16), b3=params["b3"].astype(f32),
        w6=params["w6"].astype(bf16), b6=params["b6"].astype(f32),
        w7=params["w7"].astype(bf16), b7=params["b7"].astype(f32),
        # Final layers run on the VPU -> keep them f32 rows [1, HIDDEN].
        w4r=params["w4"].T.astype(f32),
        w8r=params["w8"].T.astype(f32),
        b_out=b_out,
    )


def critic_forward(state, action, p):
    """Pallas equivalent of Critic.forward -> (q1, q2), each [B, 1] f32.

    `p` is the output of prepare_params().
    """
    B = state.shape[0]
    # Concat-once in the wrapper; stream the merged input in bf16 (layer-1
    # operands are bf16 anyway, so numerics are unchanged).
    sa = jnp.concatenate([state, action], axis=1).astype(jnp.bfloat16)

    TB = _pick_tile(B)
    grid = (pl.cdiv(B, TB),)

    def resident(arr):
        # Constant block index -> weight stays VMEM-resident across tiles.
        return pl.BlockSpec(arr.shape, lambda i: (0, 0))

    weights = [p["w_in"], p["b_in"],
               p["w2"], p["b2"], p["w3"], p["b3"],
               p["w6"], p["b6"], p["w7"], p["b7"],
               p["w4r"], p["w8r"], p["b_out"]]

    in_specs = ([pl.BlockSpec((TB, D_IN), lambda i: (i, 0))]
                + [resident(a) for a in weights])
    out_specs = pl.BlockSpec((TB, 2), lambda i: (i, 0))

    flops = 2 * B * (D_IN * 2 * HIDDEN + 4 * HIDDEN * HIDDEN + 2 * HIDDEN)
    bytes_accessed = (sum(int(a.size) * a.dtype.itemsize for a in weights)
                      + B * D_IN * 2 + B * 2 * 4)

    q = pl.pallas_call(
        _critic_kernel,
        out_shape=jax.ShapeDtypeStruct((B, 2), jnp.float32),
        grid=grid,
        in_specs=in_specs,
        out_specs=out_specs,
        compiler_params=pltpu.CompilerParams(
            dimension_semantics=("parallel",),
            vmem_limit_bytes=48 * 1024 * 1024),
        cost_estimate=pl.CostEstimate(flops=flops, transcendentals=0,
                                      bytes_accessed=bytes_accessed),
    )(sa, *weights)

    return q[:, 0:1], q[:, 1:2]


def init_params(key):
    """Deterministic synthetic init (PyTorch-style uniform +-1/sqrt(fan_in))."""
    layer_dims = [
        (D_IN, HIDDEN), (HIDDEN, HIDDEN), (HIDDEN, HIDDEN), (HIDDEN, 1),   # Q1
        (D_IN, HIDDEN), (HIDDEN, HIDDEN), (HIDDEN, HIDDEN), (HIDDEN, 1),   # Q2
    ]
    params = {}
    for i, (fan_in, fan_out) in enumerate(layer_dims, start=1):
        key, kw, kb = jax.random.split(key, 3)
        bound = 1.0 / jnp.sqrt(jnp.float32(fan_in))
        params[f"w{i}"] = jax.random.uniform(
            kw, (fan_in, fan_out), jnp.float32, -bound, bound)
        params[f"b{i}"] = jax.random.uniform(
            kb, (1, fan_out), jnp.float32, -bound, bound)
    return params


def _reference_forward(state, action, params):
    """Pure-JAX reference mirroring the kernel numerics: bf16 matmul operands
    and bf16 intermediate carries, f32 accumulation/bias/ReLU, f32 final
    (elementwise) layer."""
    bf16 = jnp.bfloat16
    sa = jnp.concatenate([state, action], axis=1).astype(bf16)

    def head(x, idx):
        w = [params[f"w{j}"] for j in idx]
        b = [params[f"b{j}"] for j in idx]
        h = jnp.maximum(jnp.dot(x, w[0].astype(bf16),
                                preferred_element_type=jnp.float32) + b[0], 0.0)
        h = h.astype(bf16)
        h = jnp.maximum(jnp.dot(h, w[1].astype(bf16),
                                preferred_element_type=jnp.float32) + b[1], 0.0)
        h = h.astype(bf16)
        h = jnp.maximum(jnp.dot(h, w[2].astype(bf16),
                                preferred_element_type=jnp.float32) + b[2], 0.0)
        # Final layer as f32 elementwise multiply + reduce (matches kernel).
        return jnp.sum(h * w[3].T, axis=-1, keepdims=True) + b[3]

    return head(sa, [1, 2, 3, 4]), head(sa, [5, 6, 7, 8])


if __name__ == "__main__":
    key = jax.random.PRNGKey(0)
    kp, ks, ka = jax.random.split(key, 3)

    raw_params = init_params(kp)
    prepped = prepare_params(raw_params)

    batch = 8
    state = jax.random.normal(ks, (batch, STATE_DIM), jnp.float32)
    action = jax.random.normal(ka, (batch, ACTION_DIM), jnp.float32)

    fwd = jax.jit(critic_forward)
    q1, q2 = fwd(state, action, prepped)
    q1 = jax.block_until_ready(q1)
    q2 = jax.block_until_ready(q2)

    r1, r2 = _reference_forward(state, action, raw_params)
    assert q1.shape == (batch, 1) and q2.shape == (batch, 1)
    assert jnp.allclose(q1, r1, atol=1e-2, rtol=1e-2), float(jnp.max(jnp.abs(q1 - r1)))
    assert jnp.allclose(q2, r2, atol=1e-2, rtol=1e-2), float(jnp.max(jnp.abs(q2 - r2)))

    print("KERNEL_OK")
</pallas_src>

<mosaic_0001>
module attributes {stable_mosaic.version = 11 : i64} {
  func.func @_critic_kernel(%arg0: i32, %arg1: memref<128x23xbf16, #tpu.memory_space<vmem>>, %arg2: memref<23x512xbf16, #tpu.memory_space<vmem>>, %arg3: memref<1x512xf32, #tpu.memory_space<vmem>>, %arg4: memref<256x256xbf16, #tpu.memory_space<vmem>>, %arg5: memref<1x256xf32, #tpu.memory_space<vmem>>, %arg6: memref<256x256xbf16, #tpu.memory_space<vmem>>, %arg7: memref<1x256xf32, #tpu.memory_space<vmem>>, %arg8: memref<256x256xbf16, #tpu.memory_space<vmem>>, %arg9: memref<1x256xf32, #tpu.memory_space<vmem>>, %arg10: memref<256x256xbf16, #tpu.memory_space<vmem>>, %arg11: memref<1x256xf32, #tpu.memory_space<vmem>>, %arg12: memref<1x256xf32, #tpu.memory_space<vmem>>, %arg13: memref<1x256xf32, #tpu.memory_space<vmem>>, %arg14: memref<1x2xf32, #tpu.memory_space<vmem>>, %arg15: memref<128x2xf32, #tpu.memory_space<vmem>>) attributes {dimension_semantics = [#tpu.dimension_semantics<parallel>], iteration_bounds = array<i64: 1>, scalar_prefetch = 0 : i64, scratch_operands = 0 : i64, tpu.core_type = #tpu.core_type<tc>, window_params = [{transform_indices = @transform_0, window_bounds = array<i64: 128, 23>}, {pipeline_mode = #tpu.pipeline_mode<synchronous>, transform_indices = @transform_1, window_bounds = array<i64: 23, 512>}, {pipeline_mode = #tpu.pipeline_mode<synchronous>, transform_indices = @transform_2, window_bounds = array<i64: 1, 512>}, {pipeline_mode = #tpu.pipeline_mode<synchronous>, transform_indices = @transform_3, window_bounds = array<i64: 256, 256>}, {pipeline_mode = #tpu.pipeline_mode<synchronous>, transform_indices = @transform_4, window_bounds = array<i64: 1, 256>}, {pipeline_mode = #tpu.pipeline_mode<synchronous>, transform_indices = @transform_5, window_bounds = array<i64: 256, 256>}, {pipeline_mode = #tpu.pipeline_mode<synchronous>, transform_indices = @transform_6, window_bounds = array<i64: 1, 256>}, {pipeline_mode = #tpu.pipeline_mode<synchronous>, transform_indices = @transform_7, window_bounds = array<i64: 256, 256>}, {pipeline_mode = #tpu.pipeline_mode<synchronous>, transform_indices = @transform_8, window_bounds = array<i64: 1, 256>}, {pipeline_mode = #tpu.pipeline_mode<synchronous>, transform_indices = @transform_9, window_bounds = array<i64: 256, 256>}, {pipeline_mode = #tpu.pipeline_mode<synchronous>, transform_indices = @transform_10, window_bounds = array<i64: 1, 256>}, {pipeline_mode = #tpu.pipeline_mode<synchronous>, transform_indices = @transform_11, window_bounds = array<i64: 1, 256>}, {pipeline_mode = #tpu.pipeline_mode<synchronous>, transform_indices = @transform_12, window_bounds = array<i64: 1, 256>}, {pipeline_mode = #tpu.pipeline_mode<synchronous>, transform_indices = @transform_13, window_bounds = array<i64: 1, 2>}, {transform_indices = @transform_14, window_bounds = array<i64: 128, 2>}]} {
    %c0 = arith.constant 0 : index
    %c0_0 = arith.constant 0 : index
    %0 = vector.load %arg1[%c0, %c0_0] : memref<128x23xbf16, #tpu.memory_space<vmem>>, vector<128x23xbf16>
    %c0_1 = arith.constant 0 : index
    %c0_2 = arith.constant 0 : index
    %1 = vector.load %arg2[%c0_1, %c0_2] : memref<23x512xbf16, #tpu.memory_space<vmem>>, vector<23x512xbf16>
    %cst = arith.constant dense<0.000000e+00> : vector<128x512xf32>
    %2 = tpu.matmul %0, %1, %cst {dimension_numbers = #tpu.dot_dimension_numbers<[1], [0], [0], [1], [0, 0, 1, 1], [], []>} : vector<128x23xbf16>, vector<23x512xbf16>, vector<128x512xf32> -> vector<128x512xf32>
    %c0_3 = arith.constant 0 : index
    %c0_4 = arith.constant 0 : index
    %3 = vector.load %arg3[%c0_3, %c0_4] : memref<1x512xf32, #tpu.memory_space<vmem>>, vector<1x512xf32>
    %4 = vector.broadcast %3 : vector<1x512xf32> to vector<128x512xf32>
    %5 = arith.addf %2, %4 : vector<128x512xf32>
    %cst_5 = arith.constant 0.000000e+00 : f32
    %6 = vector.broadcast %cst_5 : f32 to vector<128x512xf32>
    %7 = arith.maximumf %5, %6 : vector<128x512xf32>
    %8 = arith.truncf %7 : vector<128x512xf32> to vector<128x512xbf16>
    %9 = vector.extract_strided_slice %8 {offsets = [0, 0], sizes = [128, 256], strides = [1, 1]} : vector<128x512xbf16> to vector<128x256xbf16>
    %10 = vector.extract_strided_slice %8 {offsets = [0, 256], sizes = [128, 256], strides = [1, 1]} : vector<128x512xbf16> to vector<128x256xbf16>
    %c0_6 = arith.constant 0 : index
    %c0_7 = arith.constant 0 : index
    %11 = vector.load %arg4[%c0_6, %c0_7] : memref<256x256xbf16, #tpu.memory_space<vmem>>, vector<256x256xbf16>
    %cst_8 = arith.constant dense<0.000000e+00> : vector<128x256xf32>
    %12 = tpu.matmul %9, %11, %cst_8 {dimension_numbers = #tpu.dot_dimension_numbers<[1], [0], [0], [1], [0, 0, 1, 1], [], []>} : vector<128x256xbf16>, vector<256x256xbf16>, vector<128x256xf32> -> vector<128x256xf32>
    %c0_9 = arith.constant 0 : index
    %c0_10 = arith.constant 0 : index
    %13 = vector.load %arg5[%c0_9, %c0_10] : memref<1x256xf32, #tpu.memory_space<vmem>>, vector<1x256xf32>
    %14 = vector.broadcast %13 : vector<1x256xf32> to vector<128x256xf32>
    %15 = arith.addf %12, %14 : vector<128x256xf32>
    %cst_11 = arith.constant 0.000000e+00 : f32
    %16 = vector.broadcast %cst_11 : f32 to vector<128x256xf32>
    %17 = arith.maximumf %15, %16 : vector<128x256xf32>
    %18 = arith.truncf %17 : vector<128x256xf32> to vector<128x256xbf16>
    %c0_12 = arith.constant 0 : index
    %c0_13 = arith.constant 0 : index
    %19 = vector.load %arg6[%c0_12, %c0_13] : memref<256x256xbf16, #tpu.memory_space<vmem>>, vector<256x256xbf16>
    %cst_14 = arith.constant dense<0.000000e+00> : vector<128x256xf32>
    %20 = tpu.matmul %18, %19, %cst_14 {dimension_numbers = #tpu.dot_dimension_numbers<[1], [0], [0], [1], [0, 0, 1, 1], [], []>} : vector<128x256xbf16>, vector<256x256xbf16>, vector<128x256xf32> -> vector<128x256xf32>
    %c0_15 = arith.constant 0 : index
    %c0_16 = arith.constant 0 : index
    %21 = vector.load %arg7[%c0_15, %c0_16] : memref<1x256xf32, #tpu.memory_space<vmem>>, vector<1x256xf32>
    %22 = vector.broadcast %21 : vector<1x256xf32> to vector<128x256xf32>
    %23 = arith.addf %20, %22 : vector<128x256xf32>
    %cst_17 = arith.constant 0.000000e+00 : f32
    %24 = vector.broadcast %cst_17 : f32 to vector<128x256xf32>
    %25 = arith.maximumf %23, %24 : vector<128x256xf32>
    %c0_18 = arith.constant 0 : index
    %c0_19 = arith.constant 0 : index
    %26 = vector.load %arg8[%c0_18, %c0_19] : memref<256x256xbf16, #tpu.memory_space<vmem>>, vector<256x256xbf16>
    %cst_20 = arith.constant dense<0.000000e+00> : vector<128x256xf32>
    %27 = tpu.matmul %10, %26, %cst_20 {dimension_numbers = #tpu.dot_dimension_numbers<[1], [0], [0], [1], [0, 0, 1, 1], [], []>} : vector<128x256xbf16>, vector<256x256xbf16>, vector<128x256xf32> -> vector<128x256xf32>
    %c0_21 = arith.constant 0 : index
    %c0_22 = arith.constant 0 : index
    %28 = vector.load %arg9[%c0_21, %c0_22] : memref<1x256xf32, #tpu.memory_space<vmem>>, vector<1x256xf32>
    %29 = vector.broadcast %28 : vector<1x256xf32> to vector<128x256xf32>
    %30 = arith.addf %27, %29 : vector<128x256xf32>
    %cst_23 = arith.constant 0.000000e+00 : f32
    %31 = vector.broadcast %cst_23 : f32 to vector<128x256xf32>
    %32 = arith.maximumf %30, %31 : vector<128x256xf32>
    %33 = arith.truncf %32 : vector<128x256xf32> to vector<128x256xbf16>
    %c0_24 = arith.constant 0 : index
    %c0_25 = arith.constant 0 : index
    %34 = vector.load %arg10[%c0_24, %c0_25] : memref<256x256xbf16, #tpu.memory_space<vmem>>, vector<256x256xbf16>
    %cst_26 = arith.constant dense<0.000000e+00> : vector<128x256xf32>
    %35 = tpu.matmul %33, %34, %cst_26 {dimension_numbers = #tpu.dot_dimension_numbers<[1], [0], [0], [1], [0, 0, 1, 1], [], []>} : vector<128x256xbf16>, vector<256x256xbf16>, vector<128x256xf32> -> vector<128x256xf32>
    %c0_27 = arith.constant 0 : index
    %c0_28 = arith.constant 0 : index
    %36 = vector.load %arg11[%c0_27, %c0_28] : memref<1x256xf32, #tpu.memory_space<vmem>>, vector<1x256xf32>
    %37 = vector.broadcast %36 : vector<1x256xf32> to vector<128x256xf32>
    %38 = arith.addf %35, %37 : vector<128x256xf32>
    %cst_29 = arith.constant 0.000000e+00 : f32
    %39 = vector.broadcast %cst_29 : f32 to vector<128x256xf32>
    %40 = arith.maximumf %38, %39 : vector<128x256xf32>
    %c0_30 = arith.constant 0 : index
    %c0_31 = arith.constant 0 : index
    %41 = vector.load %arg12[%c0_30, %c0_31] : memref<1x256xf32, #tpu.memory_space<vmem>>, vector<1x256xf32>
    %42 = vector.broadcast %41 : vector<1x256xf32> to vector<128x256xf32>
    %43 = arith.mulf %25, %42 : vector<128x256xf32>
    %cst_32 = arith.constant dense<0.000000e+00> : vector<128xf32>
    %44 = vector.multi_reduction <add>, %43, %cst_32 [1] : vector<128x256xf32> to vector<128xf32>
    %45 = vector.shape_cast %44 : vector<128xf32> to vector<128x1xf32>
    %c0_33 = arith.constant 0 : index
    %c0_34 = arith.constant 0 : index
    %46 = vector.load %arg13[%c0_33, %c0_34] : memref<1x256xf32, #tpu.memory_space<vmem>>, vector<1x256xf32>
    %47 = vector.broadcast %46 : vector<1x256xf32> to vector<128x256xf32>
    %48 = arith.mulf %40, %47 : vector<128x256xf32>
    %cst_35 = arith.constant dense<0.000000e+00> : vector<128xf32>
    %49 = vector.multi_reduction <add>, %48, %cst_35 [1] : vector<128x256xf32> to vector<128xf32>
    %50 = vector.shape_cast %49 : vector<128xf32> to vector<128x1xf32>
    %51 = tpu.concatenate %45, %50 in 1 : vector<128x1xf32>, vector<128x1xf32> -> vector<128x2xf32>
    %c0_36 = arith.constant 0 : index
    %c0_37 = arith.constant 0 : index
    %52 = vector.load %arg14[%c0_36, %c0_37] : memref<1x2xf32, #tpu.memory_space<vmem>>, vector<1x2xf32>
    %53 = vector.broadcast %52 : vector<1x2xf32> to vector<128x2xf32>
    %54 = arith.addf %51, %53 : vector<128x2xf32>
    %c0_38 = arith.constant 0 : index
    %c0_39 = arith.constant 0 : index
    %55 = vector.load %arg15[%c0_38, %c0_39] : memref<128x2xf32, #tpu.memory_space<vmem>>, vector<128x2xf32>
    tpu.vector_store %arg15[%c0_38, %c0_39], %54 {strides = array<i32>} : memref<128x2xf32, #tpu.memory_space<vmem>>, vector<128x2xf32>,
    return
  }
  func.func @transform_0(%arg0: i32) -> (i32, i32) {
    %c0_i32 = arith.constant 0 : i32
    %c0_i32_0 = arith.constant 0 : i32
    return %arg0, %c0_i32 : i32, i32
  }
  func.func @transform_1(%arg0: i32) -> (i32, i32) {
    %c0_i32 = arith.constant 0 : i32
    %c0_i32_0 = arith.constant 0 : i32
    %c0_i32_1 = arith.constant 0 : i32
    return %c0_i32, %c0_i32_0 : i32, i32
  }
  func.func @transform_2(%arg0: i32) -> (i32, i32) {
    %c0_i32 = arith.constant 0 : i32
    %c0_i32_0 = arith.constant 0 : i32
    %c0_i32_1 = arith.constant 0 : i32
    return %c0_i32, %c0_i32_0 : i32, i32
  }
  func.func @transform_3(%arg0: i32) -> (i32, i32) {
    %c0_i32 = arith.constant 0 : i32
    %c0_i32_0 = arith.constant 0 : i32
    %c0_i32_1 = arith.constant 0 : i32
    return %c0_i32, %c0_i32_0 : i32, i32
  }
  func.func @transform_4(%arg0: i32) -> (i32, i32) {
    %c0_i32 = arith.constant 0 : i32
    %c0_i32_0 = arith.constant 0 : i32
    %c0_i32_1 = arith.constant 0 : i32
    return %c0_i32, %c0_i32_0 : i32, i32
  }
  func.func @transform_5(%arg0: i32) -> (i32, i32) {
    %c0_i32 = arith.constant 0 : i32
    %c0_i32_0 = arith.constant 0 : i32
    %c0_i32_1 = arith.constant 0 : i32
    return %c0_i32, %c0_i32_0 : i32, i32
  }
  func.func @transform_6(%arg0: i32) -> (i32, i32) {
    %c0_i32 = arith.constant 0 : i32
    %c0_i32_0 = arith.constant 0 : i32
    %c0_i32_1 = arith.constant 0 : i32
    return %c0_i32, %c0_i32_0 : i32, i32
  }
  func.func @transform_7(%arg0: i32) -> (i32, i32) {
    %c0_i32 = arith.constant 0 : i32
    %c0_i32_0 = arith.constant 0 : i32
    %c0_i32_1 = arith.constant 0 : i32
    return %c0_i32, %c0_i32_0 : i32, i32
  }
  func.func @transform_8(%arg0: i32) -> (i32, i32) {
    %c0_i32 = arith.constant 0 : i32
    %c0_i32_0 = arith.constant 0 : i32
    %c0_i32_1 = arith.constant 0 : i32
    return %c0_i32, %c0_i32_0 : i32, i32
  }
  func.func @transform_9(%arg0: i32) -> (i32, i32) {
    %c0_i32 = arith.constant 0 : i32
    %c0_i32_0 = arith.constant 0 : i32
    %c0_i32_1 = arith.constant 0 : i32
    return %c0_i32, %c0_i32_0 : i32, i32
  }
  func.func @transform_10(%arg0: i32) -> (i32, i32) {
    %c0_i32 = arith.constant 0 : i32
    %c0_i32_0 = arith.constant 0 : i32
    %c0_i32_1 = arith.constant 0 : i32
    return %c0_i32, %c0_i32_0 : i32, i32
  }
  func.func @transform_11(%arg0: i32) -> (i32, i32) {
    %c0_i32 = arith.constant 0 : i32
    %c0_i32_0 = arith.constant 0 : i32
    %c0_i32_1 = arith.constant 0 : i32
    return %c0_i32, %c0_i32_0 : i32, i32
  }
  func.func @transform_12(%arg0: i32) -> (i32, i32) {
    %c0_i32 = arith.constant 0 : i32
    %c0_i32_0 = arith.constant 0 : i32
    %c0_i32_1 = arith.constant 0 : i32
    return %c0_i32, %c0_i32_0 : i32, i32
  }
  func.func @transform_13(%arg0: i32) -> (i32, i32) {
    %c0_i32 = arith.constant 0 : i32
    %c0_i32_0 = arith.constant 0 : i32
    %c0_i32_1 = arith.constant 0 : i32
    return %c0_i32, %c0_i32_0 : i32, i32
  }
  func.func @transform_14(%arg0: i32) -> (i32, i32) {
    %c0_i32 = arith.constant 0 : i32
    %c0_i32_0 = arith.constant 0 : i32
    return %arg0, %c0_i32 : i32, i32
  }
}

</mosaic_0001>

<llo_original>
// kernel: critic_forward.1
$region0: #{critic_forward.1}
  #allocation0 [shape = 'u32[]', space=smem, size = 0x4, offset = 0x4, fixed_abs, tag = 'smem constant byte address 0x4 - core index']
  #allocation1 [shape = 'u32[144,128]{1,0:T(1,128)}', space=vmem, size = 0x12000, scoped, tag = 'internal scratch']
  %s0 = inlined_call_operand.vmem [shape: bf16[8,23], index: 0, kind: input, shape index: {}]
  %s1 = inlined_call_operand.vmem [shape: bf16[23,512], index: 1, kind: input, shape index: {}]
  %s2 = inlined_call_operand.vmem [shape: f32[1,512], index: 2, kind: input, shape index: {}]
  %s3 = inlined_call_operand.hbm [shape: bf16[256,256], index: 3, kind: input, shape index: {}]
  %s4 = inlined_call_operand.vmem [shape: f32[1,256], index: 4, kind: input, shape index: {}]
  %s5 = inlined_call_operand.hbm [shape: bf16[256,256], index: 5, kind: input, shape index: {}]
  %s6 = inlined_call_operand.vmem [shape: f32[1,256], index: 6, kind: input, shape index: {}]
  %s7 = inlined_call_operand.hbm [shape: bf16[256,256], index: 7, kind: input, shape index: {}]
  %s8 = inlined_call_operand.vmem [shape: f32[1,256], index: 8, kind: input, shape index: {}]
  %s9 = inlined_call_operand.hbm [shape: bf16[256,256], index: 9, kind: input, shape index: {}]
  %s10 = inlined_call_operand.vmem [shape: f32[1,256], index: 10, kind: input, shape index: {}]
  %s11 = inlined_call_operand.vmem [shape: f32[1,256], index: 11, kind: input, shape index: {}]
  %s12 = inlined_call_operand.vmem [shape: f32[1,256], index: 12, kind: input, shape index: {}]
  %s13 = inlined_call_operand.vmem [shape: f32[1,2], index: 13, kind: input, shape index: {}]
  %s14 = inlined_call_operand.vmem [shape: f32[8,2], index: 14, kind: output, shape index: {}]
  %s15 = sld [smem:[#allocation0]]
  $region116: #{critic_forward.1} parent=0
    _
  %s17 = ssub.s32 1, %s15
  %s18 = scalar_select 0, %s17, %s15
  $region1: #{critic_forward.1} parent=0
    #allocation2 [shape = 'u8[131072]{0}', space=vmem, size = 0x20000, scoped, tag = 'input window, operand 3, single buffered']
    #allocation3 [shape = 's32[1]{0}', space=sflag, size = 0x4, scoped, tag = 'scoped memory for critic_forward.1']
    #allocation4 [shape = 'u8[131072]{0}', space=vmem, size = 0x20000, scoped, tag = 'input window, operand 5, single buffered']
    #allocation5 [shape = 's32[1]{0}', space=sflag, size = 0x4, scoped, tag = 'scoped memory for critic_forward.1']
    #allocation6 [shape = 'u8[131072]{0}', space=vmem, size = 0x20000, scoped, tag = 'input window, operand 7, single buffered']
    #allocation7 [shape = 'u8[131072]{0}', space=vmem, size = 0x20000, scoped, tag = 'input window, operand 9, single buffered']
    #allocation8 [shape = 's32[1]{0}', space=sflag, size = 0x4, scoped, tag = 'scoped memory for critic_forward.1']
    #allocation9 [shape = 'u8[65536]{0}', space=vmem, size = 0x10000, scoped, tag = 'output window, operand 0, single buffered']
    %19 = vsyncpa [#allocation3], 0
    %20 = vsyncpa [#allocation5], 0
    %21 = vsyncpa [#allocation8], 0
    // Predicated region
    $region2: #{critic_forward.1} parent=1 // pred_check
      _
    $region3: #{critic_forward.1} parent=1 // pred_check_branch
      %23 = sbr.rel (0) target = $region5
    $region4: #{critic_forward.1} parent=1 // pred_region
      _
    $region5: #{critic_forward.1} parent=1 // pred_fallthru
      _
    // Predicated region
    $region6: #{critic_forward.1} parent=1 // pred_check
      _
    $region7: #{critic_forward.1} parent=1 // pred_check_branch
      %25 = sbr.rel (0) target = $region9
    $region8: #{critic_forward.1} parent=1 // pred_region
      _
    $region9: #{critic_forward.1} parent=1 // pred_fallthru
      _
    // Predicated region
    $region10: #{critic_forward.1} parent=1 // pred_check
      _
    $region11: #{critic_forward.1} parent=1 // pred_check_branch
      %27 = sbr.rel (0) target = $region13
    $region12: #{critic_forward.1} parent=1 // pred_region
      _
    $region13: #{critic_forward.1} parent=1 // pred_fallthru
      _
    // Predicated region
    $region14: #{critic_forward.1} parent=1 // pred_check
      _
    $region15: #{critic_forward.1} parent=1 // pred_check_branch
      %29 = sbr.rel (0) target = $region17
    $region16: #{critic_forward.1} parent=1 // pred_region
      %s31 = ssub.s32 4096, 4096
      %32 = vsyncadd [#allocation3], %s31
      %s33 = sshll.u32 [#allocation2], 4
      %s34 = int_to_ptr.vmem [resolvable:$true] %s33
      %39 = dma.hbm_to_vmem [thread:$0]  %s3, 4096, %s34, [#allocation3], 128, 128, 8
    $region17: #{critic_forward.1} parent=1 // pred_fallthru
      _
    // Predicated region
    $region18: #{critic_forward.1} parent=1 // pred_check
      _
    $region19: #{critic_forward.1} parent=1 // pred_check_branch
      %41 = sbr.rel (0) target = $region21
    $region20: #{critic_forward.1} parent=1 // pred_region
      _
    $region21: #{critic_forward.1} parent=1 // pred_fallthru
      _
    // Predicated region
    $region22: #{critic_forward.1} parent=1 // pred_check
      _
    $region23: #{critic_forward.1} parent=1 // pred_check_branch
      %43 = sbr.rel (0) target = $region25
    $region24: #{critic_forward.1} parent=1 // pred_region
      %s45 = ssub.s32 4096, 4096
      %46 = vsyncadd [#allocation5], %s45
      %s47 = sshll.u32 [#allocation4], 4
      %s48 = int_to_ptr.vmem [resolvable:$true] %s47
      %53 = dma.hbm_to_vmem [thread:$0]  %s5, 4096, %s48, [#allocation5], 128, 128, 8
    $region25: #{critic_forward.1} parent=1 // pred_fallthru
      _
    // Predicated region
    $region26: #{critic_forward.1} parent=1 // pred_check
      _
    $region27: #{critic_forward.1} parent=1 // pred_check_branch
      %55 = sbr.rel (0) target = $region29
    $region28: #{critic_forward.1} parent=1 // pred_region
      _
    $region29: #{critic_forward.1} parent=1 // pred_fallthru
      _
    // Predicated region
    $region30: #{critic_forward.1} parent=1 // pred_check
      _
    $region31: #{critic_forward.1} parent=1 // pred_check_branch
      %57 = sbr.rel (0) target = $region33
    $region32: #{critic_forward.1} parent=1 // pred_region
      %s59 = ssub.s32 4096, 4096
      %60 = vsyncadd [#allocation5], %s59
      %s61 = sshll.u32 [#allocation6], 4
      %s62 = int_to_ptr.vmem [resolvable:$true] %s61
      %67 = dma.hbm_to_vmem [thread:$0]  %s7, 4096, %s62, [#allocation5], 128, 128, 8
    $region33: #{critic_forward.1} parent=1 // pred_fallthru
      _
    // Predicated region
    $region34: #{critic_forward.1} parent=1 // pred_check
      _
    $region35: #{critic_forward.1} parent=1 // pred_check_branch
      %69 = sbr.rel (0) target = $region37
    $region36: #{critic_forward.1} parent=1 // pred_region
      _
    $region37: #{critic_forward.1} parent=1 // pred_fallthru
      _
    // Predicated region
    $region38: #{critic_forward.1} parent=1 // pred_check
      _
    $region39: #{critic_forward.1} parent=1 // pred_check_branch
      %71 = sbr.rel (0) target = $region41
    $region40: #{critic_forward.1} parent=1 // pred_region
      %s73 = ssub.s32 4096, 4096
      %74 = vsyncadd [#allocation8], %s73
      %s75 = sshll.u32 [#allocation7], 4
      %s76 = int_to_ptr.vmem [resolvable:$true] %s75
      %81 = dma.hbm_to_vmem [thread:$0]  %s9, 4096, %s76, [#allocation8], 128, 128, 8
    $region41: #{critic_forward.1} parent=1 // pred_fallthru
      _
    // Predicated region
    $region42: #{critic_forward.1} parent=1 // pred_check
      _
    $region43: #{critic_forward.1} parent=1 // pred_check_branch
      %83 = sbr.rel (0) target = $region45
    $region44: #{critic_forward.1} parent=1 // pred_region
      _
    $region45: #{critic_forward.1} parent=1 // pred_fallthru
      _
    // Predicated region
    $region46: #{critic_forward.1} parent=1 // pred_check
      _
    $region47: #{critic_forward.1} parent=1 // pred_check_branch
      %85 = sbr.rel (0) target = $region49
    $region48: #{critic_forward.1} parent=1 // pred_region
      _
    $region49: #{critic_forward.1} parent=1 // pred_fallthru
      _
    // Predicated region
    $region50: #{critic_forward.1} parent=1 // pred_check
      _
    $region51: #{critic_forward.1} parent=1 // pred_check_branch
      %87 = sbr.rel (0) target = $region53
    $region52: #{critic_forward.1} parent=1 // pred_region
      _
    $region53: #{critic_forward.1} parent=1 // pred_fallthru
      _
    // Predicated region
    $region54: #{critic_forward.1} parent=1 // pred_check
      _
    $region55: #{critic_forward.1} parent=1 // pred_check_branch
      %89 = sbr.rel (0) target = $region57
    $region56: #{critic_forward.1} parent=1 // pred_region
      _
    $region57: #{critic_forward.1} parent=1 // pred_fallthru
      _
    // Predicated region
    $region58: #{critic_forward.1} parent=1 // pred_check
      _
    $region59: #{critic_forward.1} parent=1 // pred_check_branch
      %91 = sbr.rel (0) target = $region61
    $region60: #{critic_forward.1} parent=1 // pred_region
      %92 = dma.done [#allocation3], 4096
    $region61: #{critic_forward.1} parent=1 // pred_fallthru
      _
    // Predicated region
    $region62: #{critic_forward.1} parent=1 // pred_check
      _
    $region63: #{critic_forward.1} parent=1 // pred_check_branch
      %94 = sbr.rel (0) target = $region65
    $region64: #{critic_forward.1} parent=1 // pred_region
      %95 = dma.done [#allocation5], 4096
    $region65: #{critic_forward.1} parent=1 // pred_fallthru
      _
    // Predicated region
    $region66: #{critic_forward.1} parent=1 // pred_check
      _
    $region67: #{critic_forward.1} parent=1 // pred_check_branch
      %97 = sbr.rel (0) target = $region69
    $region68: #{critic_forward.1} parent=1 // pred_region
      %98 = dma.done [#allocation5], 4096
    $region69: #{critic_forward.1} parent=1 // pred_fallthru
      _
    // Predicated region
    $region70: #{critic_forward.1} parent=1 // pred_check
      _
    $region71: #{critic_forward.1} parent=1 // pred_check_branch
      %100 = sbr.rel (0) target = $region73
    $region72: #{critic_forward.1} parent=1 // pred_region
      %101 = dma.done [#allocation8], 4096
    $region73: #{critic_forward.1} parent=1 // pred_fallthru
      _
    %v103 = vld [vmem:[%s0] sm:$0xf]
    %v104 = vld [vmem:[%s0 + $0x4] sm:$0xf]
    %v105 = vld [vmem:[%s0 + $0x8] sm:$0xf]
    %v106 = vld [vmem:[%s0 + $0xc] sm:$0xf]
    %v107 = vld [vmem:[%s0 + $0x10] sm:$0xf]
    %v108 = vld [vmem:[%s0 + $0x14] sm:$0xf]
    %v109 = vld [vmem:[%s0 + $0x18] sm:$0xf]
    %v110 = vld [vmem:[%s0 + $0x1c] sm:$0xf]
    %v111 = vld [vmem:[%s0 + $0x20] sm:$0xf]
    %v112 = vld [vmem:[%s0 + $0x24] sm:$0xf]
    %v113 = vld [vmem:[%s0 + $0x28] sm:$0xf]
    %v114 = vld [vmem:[%s0 + $0x2c] sm:$0xf]
    %v115 = vld [vmem:[%s0 + $0x30] sm:$0xf]
    %v116 = vld [vmem:[%s0 + $0x34] sm:$0xf]
    %v117 = vld [vmem:[%s0 + $0x38] sm:$0xf]
    %v118 = vld [vmem:[%s0 + $0x3c] sm:$0xf]
    %v119 = vld [vmem:[%s1] sm:$0xff]
    %v120 = vld [vmem:[%s1 + $0x8] sm:$0xff]
    %v121 = vld [vmem:[%s1 + $0x10] sm:$0xff]
    %v122 = vld [vmem:[%s1 + $0x18] sm:$0xff]
    %v123 = vld [vmem:[%s1 + $0x20] sm:$0xff]
    %v124 = vld [vmem:[%s1 + $0x28] sm:$0xff]
    %v125 = vld [vmem:[%s2] sm:$0xf]
    %v127 = vlaneseq
    %v128 = vshrl.u32 %v127, 7
    %v129 = vsub.s32 0, %v128
    %v130 = vrot.slane %v125, %v129
    %v131 = vlaneseq
    %v132 = vshrl.u32 %v131, 7
    %v133 = vsub.s32 1, %v132
    %v134 = vrot.slane %v125, %v133
    %v135 = vlaneseq
    %v136 = vshrl.u32 %v135, 7
    %v137 = vsub.s32 2, %v136
    %v138 = vrot.slane %v125, %v137
    %v139 = vlaneseq
    %v140 = vshrl.u32 %v139, 7
    %v141 = vsub.s32 3, %v140
    %v142 = vrot.slane %v125, %v141
    %v163 = vunpack.c.l.b16 %v103
    %v164 = vunpack.c.l.b16 %v104
    %v165 = vunpack.c.l.b16 %v105
    %v166 = vunpack.c.l.b16 %v106
    %v167 = vunpack.c.l.b16 %v107
    %v168 = vunpack.c.l.b16 %v108
    %v169 = vunpack.c.l.b16 %v109
    %v170 = vunpack.c.l.b16 %v110
    %v171 = vunpack.c.l.b16 %v111
    %v172 = vunpack.c.l.b16 %v112
    %v173 = vunpack.c.l.b16 %v113
    %v174 = vunpack.c.l.b16 %v114
    %v175 = vunpack.c.l.b16 %v115
    %v176 = vunpack.c.l.b16 %v116
    %v177 = vunpack.c.l.b16 %v117
    %v178 = vunpack.c.l.b16 %v118
    %v179 = vpack.c.b16 %v164, %v163
    %v180 = vpack.c.b16 %v166, %v165
    %v181 = vpack.c.b16 %v168, %v167
    %v182 = vpack.c.b16 %v170, %v169
    %v183 = vpack.c.b16 %v172, %v171
    %v184 = vpack.c.b16 %v174, %v173
    %v185 = vpack.c.b16 %v176, %v175
    %v186 = vpack.c.b16 %v178, %v177
    %v193 = vunpack.c.l.b16 %v119
    %v194 = vunpack.c.h.b16 %v119
    %v195 = vunpack.c.l.b16 %v120
    %v196 = vunpack.c.h.b16 %v120
    %v197 = vunpack.c.l.b16 %v121
    %v198 = vunpack.c.h.b16 %v121
    %v199 = vunpack.c.l.b16 %v122
    %v200 = vunpack.c.h.b16 %v122
    %v201 = vunpack.c.l.b16 %v123
    %v202 = vunpack.c.h.b16 %v123
    %v203 = vunpack.c.l.b16 %v124
    %v204 = vunpack.c.h.b16 %v124
    %v205 = vpack.c.b16 %v197, %v193
    %v206 = vpack.c.b16 %v198, %v194
    %v207 = vpack.c.b16 %v199, %v195
    %v208 = vpack.c.b16 %v200, %v196
    %v209 = vpack.c.b16 %v201, %v201
    %v210 = vpack.c.b16 %v202, %v202
    %v211 = vpack.c.b16 %v203, %v203
    %v212 = vpack.c.b16 %v204, %v204
    %vm217 = vcmask 187392
    %v219 = vsel %vm217, %v179, 0
    %v222 = vsel %vm217, %v180, 0
    %v225 = vsel %vm217, %v181, 0
    %v228 = vsel %vm217, %v182, 0
    %v231 = vsel %vm217, %v183, 0
    %v234 = vsel %vm217, %v184, 0
    %v237 = vsel %vm217, %v185, 0
    %v240 = vsel %vm217, %v186, 0
    %vm242 = vcmask 1042432
    %vm243 = vcmask 1043456
    %v244 = vsel %vm242, 4294967295, 65535
    %v245 = vsel %vm243, %v244, 0
    %v247 = vand.u32 %v209, %v245
    %v250 = vand.u32 %v210, %v245
    %v253 = vand.u32 %v211, %v245
    %v256 = vand.u32 %v212, %v245
    %258 = vmatprep.subr.bf16.mxu0 %v206
    %259 = vmatpush1.bf16.msra.mxu0 %v205
    %260 = vmatprep.subr.bf16.mxu0 %v250
    %261 = vmatpush1.bf16.msra.mxu0 %v247
    %262 = vmatprep.subr.bf16.mxu0 0
    %263 = vmatpush1.bf16.msra.mxu0 0
    %264 = vmatprep.subr.bf16.mxu0 0
    %265 = vmatpush1.bf16.msra.mxu0 0
    %266 = vmatprep.subr.bf16.mxu0 0
    %267 = vmatpush1.bf16.msra.mxu0 0
    %268 = vmatprep.subr.bf16.mxu0 0
    %269 = vmatpush1.bf16.msra.mxu0 0
    %270 = vmatprep.subr.bf16.mxu0 0
    %271 = vmatpush1.bf16.msra.mxu0 0
    %272 = vmatprep.subr.bf16.mxu0 0
    %273 = vmatpush1.bf16.msra.mxu0 0
    %274 = vmatprep.subr.bf16.mxu0 0
    %275 = vmatpush1.bf16.msra.mxu0 0
    %276 = vmatprep.subr.bf16.mxu0 0
    %277 = vmatpush1.bf16.msra.mxu0 0
    %278 = vmatprep.subr.bf16.mxu0 0
    %279 = vmatpush1.bf16.msra.mxu0 0
    %280 = vmatprep.subr.bf16.mxu0 0
    %281 = vmatpush1.bf16.msra.mxu0 0
    %282 = vmatprep.subr.bf16.mxu0 0
    %283 = vmatpush1.bf16.msra.mxu0 0
    %284 = vmatprep.subr.bf16.mxu0 0
    %285 = vmatpush1.bf16.msra.mxu0 0
    %286 = vmatprep.subr.bf16.mxu0 0
    %287 = vmatpush1.bf16.msra.mxu0 0
    %288 = vmatprep.subr.bf16.mxu0 0
    %289 = vmatpush1.bf16.msra.mxu0 0
    %290 = vmatprep.mubr.bf16.mxu0 0
    %291 = vmatmul.mubr.bf16.gmra.mrb[0].mxu0 %v219
    %v292 = vpop.f32.mrb[0].mxu0
    %v293 = vadd.f32 %v130, %v292
    %v294 = vpop.f32.mrb[0].mxu0
    %v295 = vadd.f32 %v134, %v294
    %v296 = vpop.f32.mrb[0].mxu0
    %v297 = vadd.f32 %v130, %v296
    %v298 = vpop.f32.mrb[0].mxu0
    %v299 = vadd.f32 %v134, %v298
    %300 = vmatprep.mubr.bf16.mxu0 0
    %301 = vmatmul.mubr.bf16.gmra.mrb[0].mxu0 %v222
    %v302 = vpop.f32.mrb[0].mxu0
    %v303 = vadd.f32 %v130, %v302
    %v304 = vpop.f32.mrb[0].mxu0
    %v305 = vadd.f32 %v134, %v304
    %v306 = vpop.f32.mrb[0].mxu0
    %v307 = vadd.f32 %v130, %v306
    %v308 = vpop.f32.mrb[0].mxu0
    %v309 = vadd.f32 %v134, %v308
    %310 = vmatprep.mubr.bf16.mxu0 0
    %311 = vmatmul.mubr.bf16.gmra.mrb[0].mxu0 %v225
    %v312 = vpop.f32.mrb[0].mxu0
    %v313 = vadd.f32 %v130, %v312
    %v314 = vpop.f32.mrb[0].mxu0
    %v315 = vadd.f32 %v134, %v314
    %v316 = vpop.f32.mrb[0].mxu0
    %v317 = vadd.f32 %v130, %v316
    %v318 = vpop.f32.mrb[0].mxu0
    %v319 = vadd.f32 %v134, %v318
    %320 = vmatprep.mubr.bf16.mxu0 0
    %321 = vmatmul.mubr.bf16.gmra.mrb[0].mxu0 %v228
    %v322 = vpop.f32.mrb[0].mxu0
    %v323 = vadd.f32 %v130, %v322
    %v324 = vpop.f32.mrb[0].mxu0
    %v325 = vadd.f32 %v134, %v324
    %v326 = vpop.f32.mrb[0].mxu0
    %v327 = vadd.f32 %v130, %v326
    %v328 = vpop.f32.mrb[0].mxu0
    %v329 = vadd.f32 %v134, %v328
    %330 = vmatprep.mubr.bf16.mxu0 0
    %331 = vmatmul.mubr.bf16.gmra.mrb[0].mxu0 %v231
    %v332 = vpop.f32.mrb[0].mxu0
    %v333 = vadd.f32 %v130, %v332
    %v334 = vpop.f32.mrb[0].mxu0
    %v335 = vadd.f32 %v134, %v334
    %v336 = vpop.f32.mrb[0].mxu0
    %v337 = vadd.f32 %v130, %v336
    %v338 = vpop.f32.mrb[0].mxu0
    %v339 = vadd.f32 %v134, %v338
    %340 = vmatprep.mubr.bf16.mxu0 0
    %341 = vmatmul.mubr.bf16.gmra.mrb[0].mxu0 %v234
    %v342 = vpop.f32.mrb[0].mxu0
    %v343 = vadd.f32 %v130, %v342
    %v344 = vpop.f32.mrb[0].mxu0
    %v345 = vadd.f32 %v134, %v344
    %v346 = vpop.f32.mrb[0].mxu0
    %v347 = vadd.f32 %v130, %v346
    %v348 = vpop.f32.mrb[0].mxu0
    %v349 = vadd.f32 %v134, %v348
    %350 = vmatprep.mubr.bf16.mxu0 0
    %351 = vmatmul.mubr.bf16.gmra.mrb[0].mxu0 %v237
    %v352 = vpop.f32.mrb[0].mxu0
    %v353 = vadd.f32 %v130, %v352
    %v354 = vpop.f32.mrb[0].mxu0
    %v355 = vadd.f32 %v134, %v354
    %v356 = vpop.f32.mrb[0].mxu0
    %v357 = vadd.f32 %v130, %v356
    %v358 = vpop.f32.mrb[0].mxu0
    %v359 = vadd.f32 %v134, %v358
    %360 = vmatprep.mubr.bf16.mxu0 0
    %361 = vmatmul.mubr.bf16.gmra.mrb[0].mxu0 %v240
    %v362 = vpop.f32.mrb[0].mxu0
    %v363 = vadd.f32 %v130, %v362
    %v364 = vpop.f32.mrb[0].mxu0
    %v365 = vadd.f32 %v134, %v364
    %v366 = vpop.f32.mrb[0].mxu0
    %v367 = vadd.f32 %v130, %v366
    %v368 = vpop.f32.mrb[0].mxu0
    %v369 = vadd.f32 %v134, %v368
    %370 = vdwg.mxu0
    %371 = vmatprep.subr.bf16.mxu0 %v208
    %372 = vmatpush1.bf16.msra.mxu0 %v207
    %373 = vmatprep.subr.bf16.mxu0 %v256
    %374 = vmatpush1.bf16.msra.mxu0 %v253
    %375 = vmatprep.subr.bf16.mxu0 0
    %376 = vmatpush1.bf16.msra.mxu0 0
    %377 = vmatprep.subr.bf16.mxu0 0
    %378 = vmatpush1.bf16.msra.mxu0 0
    %379 = vmatprep.subr.bf16.mxu0 0
    %380 = vmatpush1.bf16.msra.mxu0 0
    %381 = vmatprep.subr.bf16.mxu0 0
    %382 = vmatpush1.bf16.msra.mxu0 0
    %383 = vmatprep.subr.bf16.mxu0 0
    %384 = vmatpush1.bf16.msra.mxu0 0
    %385 = vmatprep.subr.bf16.mxu0 0
    %386 = vmatpush1.bf16.msra.mxu0 0
    %387 = vmatprep.subr.bf16.mxu0 0
    %388 = vmatpush1.bf16.msra.mxu0 0
    %389 = vmatprep.subr.bf16.mxu0 0
    %390 = vmatpush1.bf16.msra.mxu0 0
    %391 = vmatprep.subr.bf16.mxu0 0
    %392 = vmatpush1.bf16.msra.mxu0 0
    %393 = vmatprep.subr.bf16.mxu0 0
    %394 = vmatpush1.bf16.msra.mxu0 0
    %395 = vmatprep.subr.bf16.mxu0 0
    %396 = vmatpush1.bf16.msra.mxu0 0
    %397 = vmatprep.subr.bf16.mxu0 0
    %398 = vmatpush1.bf16.msra.mxu0 0
    %399 = vmatprep.subr.bf16.mxu0 0
    %400 = vmatpush1.bf16.msra.mxu0 0
    %401 = vmatprep.subr.bf16.mxu0 0
    %402 = vmatpush1.bf16.msra.mxu0 0
    %403 = vmatprep.mubr.bf16.mxu0 0
    %404 = vmatmul.mubr.bf16.gmra.mrb[0].mxu0 %v219
    %v405 = vpop.f32.mrb[0].mxu0
    %v406 = vadd.f32 %v138, %v405
    %v407 = vpop.f32.mrb[0].mxu0
    %v408 = vadd.f32 %v142, %v407
    %v409 = vpop.f32.mrb[0].mxu0
    %v410 = vadd.f32 %v138, %v409
    %v411 = vpop.f32.mrb[0].mxu0
    %v412 = vadd.f32 %v142, %v411
    %413 = vmatprep.mubr.bf16.mxu0 0
    %414 = vmatmul.mubr.bf16.gmra.mrb[0].mxu0 %v222
    %v415 = vpop.f32.mrb[0].mxu0
    %v416 = vadd.f32 %v138, %v415
    %v417 = vpop.f32.mrb[0].mxu0
    %v418 = vadd.f32 %v142, %v417
    %v419 = vpop.f32.mrb[0].mxu0
    %v420 = vadd.f32 %v138, %v419
    %v421 = vpop.f32.mrb[0].mxu0
    %v422 = vadd.f32 %v142, %v421
    %423 = vmatprep.mubr.bf16.mxu0 0
    %424 = vmatmul.mubr.bf16.gmra.mrb[0].mxu0 %v225
    %v425 = vpop.f32.mrb[0].mxu0
    %v426 = vadd.f32 %v138, %v425
    %v427 = vpop.f32.mrb[0].mxu0
    %v428 = vadd.f32 %v142, %v427
    %v429 = vpop.f32.mrb[0].mxu0
    %v430 = vadd.f32 %v138, %v429
    %v431 = vpop.f32.mrb[0].mxu0
    %v432 = vadd.f32 %v142, %v431
    %433 = vmatprep.mubr.bf16.mxu0 0
    %434 = vmatmul.mubr.bf16.gmra.mrb[0].mxu0 %v228
    %v435 = vpop.f32.mrb[0].mxu0
    %v436 = vadd.f32 %v138, %v435
    %v437 = vpop.f32.mrb[0].mxu0
    %v438 = vadd.f32 %v142, %v437
    %v439 = vpop.f32.mrb[0].mxu0
    %v440 = vadd.f32 %v138, %v439
    %v441 = vpop.f32.mrb[0].mxu0
    %v442 = vadd.f32 %v142, %v441
    %443 = vmatprep.mubr.bf16.mxu0 0
    %444 = vmatmul.mubr.bf16.gmra.mrb[0].mxu0 %v231
    %v445 = vpop.f32.mrb[0].mxu0
    %v446 = vadd.f32 %v138, %v445
    %v447 = vpop.f32.mrb[0].mxu0
    %v448 = vadd.f32 %v142, %v447
    %v449 = vpop.f32.mrb[0].mxu0
    %v450 = vadd.f32 %v138, %v449
    %v451 = vpop.f32.mrb[0].mxu0
    %v452 = vadd.f32 %v142, %v451
    %453 = vmatprep.mubr.bf16.mxu0 0
    %454 = vmatmul.mubr.bf16.gmra.mrb[0].mxu0 %v234
    %v455 = vpop.f32.mrb[0].mxu0
    %v456 = vadd.f32 %v138, %v455
    %v457 = vpop.f32.mrb[0].mxu0
    %v458 = vadd.f32 %v142, %v457
    %v459 = vpop.f32.mrb[0].mxu0
    %v460 = vadd.f32 %v138, %v459
    %v461 = vpop.f32.mrb[0].mxu0
    %v462 = vadd.f32 %v142, %v461
    %463 = vmatprep.mubr.bf16.mxu0 0
    %464 = vmatmul.mubr.bf16.gmra.mrb[0].mxu0 %v237
    %v465 = vpop.f32.mrb[0].mxu0
    %v466 = vadd.f32 %v138, %v465
    %v467 = vpop.f32.mrb[0].mxu0
    %v468 = vadd.f32 %v142, %v467
    %v469 = vpop.f32.mrb[0].mxu0
    %v470 = vadd.f32 %v138, %v469
    %v471 = vpop.f32.mrb[0].mxu0
    %v472 = vadd.f32 %v142, %v471
    %473 = vmatprep.mubr.bf16.mxu0 0
    %474 = vmatmul.mubr.bf16.gmra.mrb[0].mxu0 %v240
    %v475 = vpop.f32.mrb[0].mxu0
    %v476 = vadd.f32 %v138, %v475
    %v477 = vpop.f32.mrb[0].mxu0
    %v478 = vadd.f32 %v142, %v477
    %v479 = vpop.f32.mrb[0].mxu0
    %v480 = vadd.f32 %v138, %v479
    %v481 = vpop.f32.mrb[0].mxu0
    %v482 = vadd.f32 %v142, %v481
    %483 = vdwg.mxu0
    %v484 = vmax.f32 %v293, 0.0
    %v485 = vmax.f32 %v295, 0.0
    %v486 = vmax.f32 %v406, 0.0
    %v487 = vmax.f32 %v408, 0.0
    %v488 = vmax.f32 %v297, 0.0
    %v489 = vmax.f32 %v299, 0.0
    %v490 = vmax.f32 %v410, 0.0
    %v491 = vmax.f32 %v412, 0.0
    %v492 = vmax.f32 %v303, 0.0
    %v493 = vmax.f32 %v305, 0.0
    %v494 = vmax.f32 %v416, 0.0
    %v495 = vmax.f32 %v418, 0.0
    %v496 = vmax.f32 %v307, 0.0
    %v497 = vmax.f32 %v309, 0.0
    %v498 = vmax.f32 %v420, 0.0
    %v499 = vmax.f32 %v422, 0.0
    %v500 = vmax.f32 %v313, 0.0
    %v501 = vmax.f32 %v315, 0.0
    %v502 = vmax.f32 %v426, 0.0
    %v503 = vmax.f32 %v428, 0.0
    %v504 = vmax.f32 %v317, 0.0
    %v505 = vmax.f32 %v319, 0.0
    %v506 = vmax.f32 %v430, 0.0
    %v507 = vmax.f32 %v432, 0.0
    %v508 = vmax.f32 %v323, 0.0
    %v509 = vmax.f32 %v325, 0.0
    %v510 = vmax.f32 %v436, 0.0
    %v511 = vmax.f32 %v438, 0.0
    %v512 = vmax.f32 %v327, 0.0
    %v513 = vmax.f32 %v329, 0.0
    %v514 = vmax.f32 %v440, 0.0
    %v515 = vmax.f32 %v442, 0.0
    %v516 = vmax.f32 %v333, 0.0
    %v517 = vmax.f32 %v335, 0.0
    %v518 = vmax.f32 %v446, 0.0
    %v519 = vmax.f32 %v448, 0.0
    %v520 = vmax.f32 %v337, 0.0
    %v521 = vmax.f32 %v339, 0.0
    %v522 = vmax.f32 %v450, 0.0
    %v523 = vmax.f32 %v452, 0.0
    %v524 = vmax.f32 %v343, 0.0
    %v525 = vmax.f32 %v345, 0.0
    %v526 = vmax.f32 %v456, 0.0
    %v527 = vmax.f32 %v458, 0.0
    %v528 = vmax.f32 %v347, 0.0
    %v529 = vmax.f32 %v349, 0.0
    %v530 = vmax.f32 %v460, 0.0
    %v531 = vmax.f32 %v462, 0.0
    %v532 = vmax.f32 %v353, 0.0
    %v533 = vmax.f32 %v355, 0.0
    %v534 = vmax.f32 %v466, 0.0
    %v535 = vmax.f32 %v468, 0.0
    %v536 = vmax.f32 %v357, 0.0
    %v537 = vmax.f32 %v359, 0.0
    %v538 = vmax.f32 %v470, 0.0
    %v539 = vmax.f32 %v472, 0.0
    %v540 = vmax.f32 %v363, 0.0
    %v541 = vmax.f32 %v365, 0.0
    %v542 = vmax.f32 %v476, 0.0
    %v543 = vmax.f32 %v478, 0.0
    %v544 = vmax.f32 %v367, 0.0
    %v545 = vmax.f32 %v369, 0.0
    %v546 = vmax.f32 %v480, 0.0
    %v547 = vmax.f32 %v482, 0.0
    %v548 = vpack.c.bf16 %v488, %v484
    %v549 = vpack.c.bf16 %v489, %v485
    %v550 = vpack.c.bf16 %v490, %v486
    %v551 = vpack.c.bf16 %v491, %v487
    %v552 = vpack.c.bf16 %v496, %v492
    %v553 = vpack.c.bf16 %v497, %v493
    %v554 = vpack.c.bf16 %v498, %v494
    %v555 = vpack.c.bf16 %v499, %v495
    %v556 = vpack.c.bf16 %v504, %v500
    %v557 = vpack.c.bf16 %v505, %v501
    %v558 = vpack.c.bf16 %v506, %v502
    %v559 = vpack.c.bf16 %v507, %v503
    %v560 = vpack.c.bf16 %v512, %v508
    %v561 = vpack.c.bf16 %v513, %v509
    %v562 = vpack.c.bf16 %v514, %v510
    %v563 = vpack.c.bf16 %v515, %v511
    %v564 = vpack.c.bf16 %v520, %v516
    %v565 = vpack.c.bf16 %v521, %v517
    %v566 = vpack.c.bf16 %v522, %v518
    %v567 = vpack.c.bf16 %v523, %v519
    %v568 = vpack.c.bf16 %v528, %v524
    %v569 = vpack.c.bf16 %v529, %v525
    %v570 = vpack.c.bf16 %v530, %v526
    %v571 = vpack.c.bf16 %v531, %v527
    %v572 = vpack.c.bf16 %v536, %v532
    %v573 = vpack.c.bf16 %v537, %v533
    %v574 = vpack.c.bf16 %v538, %v534
    %v575 = vpack.c.bf16 %v539, %v535
    %v576 = vpack.c.bf16 %v544, %v540
    %v577 = vpack.c.bf16 %v545, %v541
    %v578 = vpack.c.bf16 %v546, %v542
    %v579 = vpack.c.bf16 %v547, %v543
    %v580 = vld [vmem:[#allocation2] sm:$0xff]
    %v581 = vld [vmem:[#allocation2 + $0x8] sm:$0xff]
    %v582 = vld [vmem:[#allocation2 + $0x10] sm:$0xff]
    %v583 = vld [vmem:[#allocation2 + $0x18] sm:$0xff]
    %v584 = vld [vmem:[#allocation2 + $0x20] sm:$0xff]
    %v585 = vld [vmem:[#allocation2 + $0x28] sm:$0xff]
    %v586 = vld [vmem:[#allocation2 + $0x30] sm:$0xff]
    %v587 = vld [vmem:[#allocation2 + $0x38] sm:$0xff]
    %v588 = vld [vmem:[#allocation2 + $0x40] sm:$0xff]
    %v589 = vld [vmem:[#allocation2 + $0x48] sm:$0xff]
    %v590 = vld [vmem:[#allocation2 + $0x50] sm:$0xff]
    %v591 = vld [vmem:[#allocation2 + $0x58] sm:$0xff]
    %v592 = vld [vmem:[#allocation2 + $0x60] sm:$0xff]
    %v593 = vld [vmem:[#allocation2 + $0x68] sm:$0xff]
    %v594 = vld [vmem:[#allocation2 + $0x70] sm:$0xff]
    %v595 = vld [vmem:[#allocation2 + $0x78] sm:$0xff]
    %v596 = vld [vmem:[#allocation2 + $0x80] sm:$0xff]
    %v597 = vld [vmem:[#allocation2 + $0x88] sm:$0xff]
    %v598 = vld [vmem:[#allocation2 + $0x90] sm:$0xff]
    %v599 = vld [vmem:[#allocation2 + $0x98] sm:$0xff]
    %v600 = vld [vmem:[#allocation2 + $0xa0] sm:$0xff]
    %v601 = vld [vmem:[#allocation2 + $0xa8] sm:$0xff]
    %v602 = vld [vmem:[#allocation2 + $0xb0] sm:$0xff]
    %v603 = vld [vmem:[#allocation2 + $0xb8] sm:$0xff]
    %v604 = vld [vmem:[#allocation2 + $0xc0] sm:$0xff]
    %v605 = vld [vmem:[#allocation2 + $0xc8] sm:$0xff]
    %v606 = vld [vmem:[#allocation2 + $0xd0] sm:$0xff]
    %v607 = vld [vmem:[#allocation2 + $0xd8] sm:$0xff]
    %v608 = vld [vmem:[#allocation2 + $0xe0] sm:$0xff]
    %v609 = vld [vmem:[#allocation2 + $0xe8] sm:$0xff]
    %v610 = vld [vmem:[#allocation2 + $0xf0] sm:$0xff]
    %v611 = vld [vmem:[#allocation2 + $0xf8] sm:$0xff]
    %v612 = vld [vmem:[%s4] sm:$0x3]
    %v614 = vlaneseq
    %v615 = vshrl.u32 %v614, 7
    %v616 = vsub.s32 0, %v615
    %v617 = vrot.slane %v612, %v616
    %v618 = vlaneseq
    %v619 = vshrl.u32 %v618, 7
    %v620 = vsub.s32 1, %v619
    %v621 = vrot.slane %v612, %v620
    %v656 = vunpack.c.l.b16 %v580
    %v657 = vunpack.c.h.b16 %v580
    %v658 = vunpack.c.l.b16 %v581
    %v659 = vunpack.c.h.b16 %v581
    %v660 = vunpack.c.l.b16 %v582
    %v661 = vunpack.c.h.b16 %v582
    %v662 = vunpack.c.l.b16 %v583
    %v663 = vunpack.c.h.b16 %v583
    %v664 = vunpack.c.l.b16 %v584
    %v665 = vunpack.c.h.b16 %v584
    %v666 = vunpack.c.l.b16 %v585
    %v667 = vunpack.c.h.b16 %v585
    %v668 = vunpack.c.l.b16 %v586
    %v669 = vunpack.c.h.b16 %v586
    %v670 = vunpack.c.l.b16 %v587
    %v671 = vunpack.c.h.b16 %v587
    %v672 = vunpack.c.l.b16 %v588
    %v673 = vunpack.c.h.b16 %v588
    %v674 = vunpack.c.l.b16 %v589
    %v675 = vunpack.c.h.b16 %v589
    %v676 = vunpack.c.l.b16 %v590
    %v677 = vunpack.c.h.b16 %v590
    %v678 = vunpack.c.l.b16 %v591
    %v679 = vunpack.c.h.b16 %v591
    %v680 = vunpack.c.l.b16 %v592
    %v681 = vunpack.c.h.b16 %v592
    %v682 = vunpack.c.l.b16 %v593
    %v683 = vunpack.c.h.b16 %v593
    %v684 = vunpack.c.l.b16 %v594
    %v685 = vunpack.c.h.b16 %v594
    %v686 = vunpack.c.l.b16 %v595
    %v687 = vunpack.c.h.b16 %v595
    %v688 = vunpack.c.l.b16 %v596
    %v689 = vunpack.c.h.b16 %v596
    %v690 = vunpack.c.l.b16 %v597
    %v691 = vunpack.c.h.b16 %v597
    %v692 = vunpack.c.l.b16 %v598
    %v693 = vunpack.c.h.b16 %v598
    %v694 = vunpack.c.l.b16 %v599
    %v695 = vunpack.c.h.b16 %v599
    %v696 = vunpack.c.l.b16 %v600
    %v697 = vunpack.c.h.b16 %v600
    %v698 = vunpack.c.l.b16 %v601
    %v699 = vunpack.c.h.b16 %v601
    %v700 = vunpack.c.l.b16 %v602
    %v701 = vunpack.c.h.b16 %v602
    %v702 = vunpack.c.l.b16 %v603
    %v703 = vunpack.c.h.b16 %v603
    %v704 = vunpack.c.l.b16 %v604
    %v705 = vunpack.c.h.b16 %v604
    %v706 = vunpack.c.l.b16 %v605
    %v707 = vunpack.c.h.b16 %v605
    %v708 = vunpack.c.l.b16 %v606
    %v709 = vunpack.c.h.b16 %v606
    %v710 = vunpack.c.l.b16 %v607
    %v711 = vunpack.c.h.b16 %v607
    %v712 = vunpack.c.l.b16 %v608
    %v713 = vunpack.c.h.b16 %v608
    %v714 = vunpack.c.l.b16 %v609
    %v715 = vunpack.c.h.b16 %v609
    %v716 = vunpack.c.l.b16 %v610
    %v717 = vunpack.c.h.b16 %v610
    %v718 = vunpack.c.l.b16 %v611
    %v719 = vunpack.c.h.b16 %v611
    %v720 = vpack.c.b16 %v658, %v656
    %v721 = vpack.c.b16 %v659, %v657
    %v722 = vpack.c.b16 %v662, %v660
    %v723 = vpack.c.b16 %v663, %v661
    %v724 = vpack.c.b16 %v666, %v664
    %v725 = vpack.c.b16 %v667, %v665
    %v726 = vpack.c.b16 %v670, %v668
    %v727 = vpack.c.b16 %v671, %v669
    %v728 = vpack.c.b16 %v674, %v672
    %v729 = vpack.c.b16 %v675, %v673
    %v730 = vpack.c.b16 %v678, %v676
    %v731 = vpack.c.b16 %v679, %v677
    %v732 = vpack.c.b16 %v682, %v680
    %v733 = vpack.c.b16 %v683, %v681
    %v734 = vpack.c.b16 %v686, %v684
    %v735 = vpack.c.b16 %v687, %v685
    %v736 = vpack.c.b16 %v690, %v688
    %v737 = vpack.c.b16 %v691, %v689
    %v738 = vpack.c.b16 %v694, %v692
    %v739 = vpack.c.b16 %v695, %v693
    %v740 = vpack.c.b16 %v698, %v696
    %v741 = vpack.c.b16 %v699, %v697
    %v742 = vpack.c.b16 %v702, %v700
    %v743 = vpack.c.b16 %v703, %v701
    %v744 = vpack.c.b16 %v706, %v704
    %v745 = vpack.c.b16 %v707, %v705
    %v746 = vpack.c.b16 %v710, %v708
    %v747 = vpack.c.b16 %v711, %v709
    %v748 = vpack.c.b16 %v714, %v712
    %v749 = vpack.c.b16 %v715, %v713
    %v750 = vpack.c.b16 %v718, %v716
    %v751 = vpack.c.b16 %v719, %v717
    %784 = vmatprep.subr.bf16.mxu0 %v721
    %785 = vmatpush1.bf16.msra.mxu0 %v720
    %786 = vmatprep.subr.bf16.mxu0 %v723
    %787 = vmatpush1.bf16.msra.mxu0 %v722
    %788 = vmatprep.subr.bf16.mxu0 %v725
    %789 = vmatpush1.bf16.msra.mxu0 %v724
    %790 = vmatprep.subr.bf16.mxu0 %v727
    %791 = vmatpush1.bf16.msra.mxu0 %v726
    %792 = vmatprep.subr.bf16.mxu0 %v729
    %793 = vmatpush1.bf16.msra.mxu0 %v728
    %794 = vmatprep.subr.bf16.mxu0 %v731
    %795 = vmatpush1.bf16.msra.mxu0 %v730
    %796 = vmatprep.subr.bf16.mxu0 %v733
    %797 = vmatpush1.bf16.msra.mxu0 %v732
    %798 = vmatprep.subr.bf16.mxu0 %v735
    %799 = vmatpush1.bf16.msra.mxu0 %v734
    %800 = vmatprep.subr.bf16.mxu0 %v737
    %801 = vmatpush1.bf16.msra.mxu0 %v736
    %802 = vmatprep.subr.bf16.mxu0 %v739
    %803 = vmatpush1.bf16.msra.mxu0 %v738
    %804 = vmatprep.subr.bf16.mxu0 %v741
    %805 = vmatpush1.bf16.msra.mxu0 %v740
    %806 = vmatprep.subr.bf16.mxu0 %v743
    %807 = vmatpush1.bf16.msra.mxu0 %v742
    %808 = vmatprep.subr.bf16.mxu0 %v745
    %809 = vmatpush1.bf16.msra.mxu0 %v744
    %810 = vmatprep.subr.bf16.mxu0 %v747
    %811 = vmatpush1.bf16.msra.mxu0 %v746
    %812 = vmatprep.subr.bf16.mxu0 %v749
    %813 = vmatpush1.bf16.msra.mxu0 %v748
    %814 = vmatprep.subr.bf16.mxu0 %v751
    %815 = vmatpush1.bf16.msra.mxu0 %v750
    %816 = vmatprep.mubr.bf16.mxu0 %v549
    %817 = vmatmul.mubr.bf16.gmra.mrb[0].mxu0 %v548
    %v818 = vpop.f32.mrb[0].mxu0
    %v819 = vadd.f32 %v617, %v818
    %v820 = vpop.f32.mrb[0].mxu0
    %v821 = vadd.f32 %v621, %v820
    %v822 = vpop.f32.mrb[0].mxu0
    %v823 = vadd.f32 %v617, %v822
    %v824 = vpop.f32.mrb[0].mxu0
    %v825 = vadd.f32 %v621, %v824
    %826 = vmatprep.mubr.bf16.mxu0 %v553
    %827 = vmatmul.mubr.bf16.gmra.mrb[0].mxu0 %v552
    %v828 = vpop.f32.mrb[0].mxu0
    %v829 = vadd.f32 %v617, %v828
    %v830 = vpop.f32.mrb[0].mxu0
    %v831 = vadd.f32 %v621, %v830
    %v832 = vpop.f32.mrb[0].mxu0
    %v833 = vadd.f32 %v617, %v832
    %v834 = vpop.f32.mrb[0].mxu0
    %v835 = vadd.f32 %v621, %v834
    %836 = vmatprep.mubr.bf16.mxu0 %v557
    %837 = vmatmul.mubr.bf16.gmra.mrb[0].mxu0 %v556
    %v838 = vpop.f32.mrb[0].mxu0
    %v839 = vadd.f32 %v617, %v838
    %v840 = vpop.f32.mrb[0].mxu0
    %v841 = vadd.f32 %v621, %v840
    %v842 = vpop.f32.mrb[0].mxu0
    %v843 = vadd.f32 %v617, %v842
    %v844 = vpop.f32.mrb[0].mxu0
    %v845 = vadd.f32 %v621, %v844
    %846 = vmatprep.mubr.bf16.mxu0 %v561
    %847 = vmatmul.mubr.bf16.gmra.mrb[0].mxu0 %v560
    %v848 = vpop.f32.mrb[0].mxu0
    %v849 = vadd.f32 %v617, %v848
    %v850 = vpop.f32.mrb[0].mxu0
    %v851 = vadd.f32 %v621, %v850
    %v852 = vpop.f32.mrb[0].mxu0
    %v853 = vadd.f32 %v617, %v852
    %v854 = vpop.f32.mrb[0].mxu0
    %v855 = vadd.f32 %v621, %v854
    %856 = vmatprep.mubr.bf16.mxu0 %v565
    %857 = vmatmul.mubr.bf16.gmra.mrb[0].mxu0 %v564
    %v858 = vpop.f32.mrb[0].mxu0
    %v859 = vadd.f32 %v617, %v858
    %v860 = vpop.f32.mrb[0].mxu0
    %v861 = vadd.f32 %v621, %v860
    %v862 = vpop.f32.mrb[0].mxu0
    %v863 = vadd.f32 %v617, %v862
    %v864 = vpop.f32.mrb[0].mxu0
    %v865 = vadd.f32 %v621, %v864
    %866 = vmatprep.mubr.bf16.mxu0 %v569
    %867 = vmatmul.mubr.bf16.gmra.mrb[0].mxu0 %v568
    %v868 = vpop.f32.mrb[0].mxu0
    %v869 = vadd.f32 %v617, %v868
    %v870 = vpop.f32.mrb[0].mxu0
    %v871 = vadd.f32 %v621, %v870
    %v872 = vpop.f32.mrb[0].mxu0
    %v873 = vadd.f32 %v617, %v872
    %v874 = vpop.f32.mrb[0].mxu0
    %v875 = vadd.f32 %v621, %v874
    %876 = vmatprep.mubr.bf16.mxu0 %v573
    %877 = vmatmul.mubr.bf16.gmra.mrb[0].mxu0 %v572
    %v878 = vpop.f32.mrb[0].mxu0
    %v879 = vadd.f32 %v617, %v878
    %v880 = vpop.f32.mrb[0].mxu0
    %v881 = vadd.f32 %v621, %v880
    %v882 = vpop.f32.mrb[0].mxu0
    %v883 = vadd.f32 %v617, %v882
    %v884 = vpop.f32.mrb[0].mxu0
    %v885 = vadd.f32 %v621, %v884
    %886 = vmatprep.mubr.bf16.mxu0 %v577
    %887 = vmatmul.mubr.bf16.gmra.mrb[0].mxu0 %v576
    %v888 = vpop.f32.mrb[0].mxu0
    %v889 = vadd.f32 %v617, %v888
    %v890 = vpop.f32.mrb[0].mxu0
    %v891 = vadd.f32 %v621, %v890
    %v892 = vpop.f32.mrb[0].mxu0
    %v893 = vadd.f32 %v617, %v892
    %v894 = vpop.f32.mrb[0].mxu0
    %v895 = vadd.f32 %v621, %v894
    %896 = vdwg.mxu0
    %v897 = vmax.f32 %v819, 0.0
    %v898 = vmax.f32 %v821, 0.0
    %v899 = vmax.f32 %v823, 0.0
    %v900 = vmax.f32 %v825, 0.0
    %v901 = vmax.f32 %v829, 0.0
    %v902 = vmax.f32 %v831, 0.0
    %v903 = vmax.f32 %v833, 0.0
    %v904 = vmax.f32 %v835, 0.0
    %v905 = vmax.f32 %v839, 0.0
    %v906 = vmax.f32 %v841, 0.0
    %v907 = vmax.f32 %v843, 0.0
    %v908 = vmax.f32 %v845, 0.0
    %v909 = vmax.f32 %v849, 0.0
    %v910 = vmax.f32 %v851, 0.0
    %v911 = vmax.f32 %v853, 0.0
    %v912 = vmax.f32 %v855, 0.0
    %v913 = vmax.f32 %v859, 0.0
    %v914 = vmax.f32 %v861, 0.0
    %v915 = vmax.f32 %v863, 0.0
    %v916 = vmax.f32 %v865, 0.0
    %v917 = vmax.f32 %v869, 0.0
    %v918 = vmax.f32 %v871, 0.0
    %v919 = vmax.f32 %v873, 0.0
    %v920 = vmax.f32 %v875, 0.0
    %v921 = vmax.f32 %v879, 0.0
    %v922 = vmax.f32 %v881, 0.0
    %v923 = vmax.f32 %v883, 0.0
    %v924 = vmax.f32 %v885, 0.0
    %v925 = vmax.f32 %v889, 0.0
    %v926 = vmax.f32 %v891, 0.0
    %v927 = vmax.f32 %v893, 0.0
    %v928 = vmax.f32 %v895, 0.0
    %v929 = vpack.c.bf16 %v899, %v897
    %v930 = vpack.c.bf16 %v900, %v898
    %v931 = vpack.c.bf16 %v903, %v901
    %v932 = vpack.c.bf16 %v904, %v902
    %v933 = vpack.c.bf16 %v907, %v905
    %v934 = vpack.c.bf16 %v908, %v906
    %v935 = vpack.c.bf16 %v911, %v909
    %v936 = vpack.c.bf16 %v912, %v910
    %v937 = vpack.c.bf16 %v915, %v913
    %v938 = vpack.c.bf16 %v916, %v914
    %v939 = vpack.c.bf16 %v919, %v917
    %v940 = vpack.c.bf16 %v920, %v918
    %v941 = vpack.c.bf16 %v923, %v921
    %v942 = vpack.c.bf16 %v924, %v922
    %v943 = vpack.c.bf16 %v927, %v925
    %v944 = vpack.c.bf16 %v928, %v926
    %v945 = vld [vmem:[#allocation4] sm:$0xff]
    %v946 = vld [vmem:[#allocation4 + $0x8] sm:$0xff]
    %v947 = vld [vmem:[#allocation4 + $0x10] sm:$0xff]
    %v948 = vld [vmem:[#allocation4 + $0x18] sm:$0xff]
    %v949 = vld [vmem:[#allocation4 + $0x20] sm:$0xff]
    %v950 = vld [vmem:[#allocation4 + $0x28] sm:$0xff]
    %v951 = vld [vmem:[#allocation4 + $0x30] sm:$0xff]
    %v952 = vld [vmem:[#allocation4 + $0x38] sm:$0xff]
    %v953 = vld [vmem:[#allocation4 + $0x40] sm:$0xff]
    %v954 = vld [vmem:[#allocation4 + $0x48] sm:$0xff]
    %v955 = vld [vmem:[#allocation4 + $0x50] sm:$0xff]
    %v956 = vld [vmem:[#allocation4 + $0x58] sm:$0xff]
    %v957 = vld [vmem:[#allocation4 + $0x60] sm:$0xff]
    %v958 = vld [vmem:[#allocation4 + $0x68] sm:$0xff]
    %v959 = vld [vmem:[#allocation4 + $0x70] sm:$0xff]
    %v960 = vld [vmem:[#allocation4 + $0x78] sm:$0xff]
    %v961 = vld [vmem:[#allocation4 + $0x80] sm:$0xff]
    %v962 = vld [vmem:[#allocation4 + $0x88] sm:$0xff]
    %v963 = vld [vmem:[#allocation4 + $0x90] sm:$0xff]
    %v964 = vld [vmem:[#allocation4 + $0x98] sm:$0xff]
    %v965 = vld [vmem:[#allocation4 + $0xa0] sm:$0xff]
    %v966 = vld [vmem:[#allocation4 + $0xa8] sm:$0xff]
    %v967 = vld [vmem:[#allocation4 + $0xb0] sm:$0xff]
    %v968 = vld [vmem:[#allocation4 + $0xb8] sm:$0xff]
    %v969 = vld [vmem:[#allocation4 + $0xc0] sm:$0xff]
    %v970 = vld [vmem:[#allocation4 + $0xc8] sm:$0xff]
    %v971 = vld [vmem:[#allocation4 + $0xd0] sm:$0xff]
    %v972 = vld [vmem:[#allocation4 + $0xd8] sm:$0xff]
    %v973 = vld [vmem:[#allocation4 + $0xe0] sm:$0xff]
    %v974 = vld [vmem:[#allocation4 + $0xe8] sm:$0xff]
    %v975 = vld [vmem:[#allocation4 + $0xf0] sm:$0xff]
    %v976 = vld [vmem:[#allocation4 + $0xf8] sm:$0xff]
    %v977 = vld [vmem:[%s6] sm:$0x3]
    %v979 = vlaneseq
    %v980 = vshrl.u32 %v979, 7
    %v981 = vsub.s32 0, %v980
    %v982 = vrot.slane %v977, %v981
    %v983 = vlaneseq
    %v984 = vshrl.u32 %v983, 7
    %v985 = vsub.s32 1, %v984
    %v986 = vrot.slane %v977, %v985
    %v1021 = vunpack.c.l.b16 %v945
    %v1022 = vunpack.c.h.b16 %v945
    %v1023 = vunpack.c.l.b16 %v946
    %v1024 = vunpack.c.h.b16 %v946
    %v1025 = vunpack.c.l.b16 %v947
    %v1026 = vunpack.c.h.b16 %v947
    %v1027 = vunpack.c.l.b16 %v948
    %v1028 = vunpack.c.h.b16 %v948
    %v1029 = vunpack.c.l.b16 %v949
    %v1030 = vunpack.c.h.b16 %v949
    %v1031 = vunpack.c.l.b16 %v950
    %v1032 = vunpack.c.h.b16 %v950
    %v1033 = vunpack.c.l.b16 %v951
    %v1034 = vunpack.c.h.b16 %v951
    %v1035 = vunpack.c.l.b16 %v952
    %v1036 = vunpack.c.h.b16 %v952
    %v1037 = vunpack.c.l.b16 %v953
    %v1038 = vunpack.c.h.b16 %v953
    %v1039 = vunpack.c.l.b16 %v954
    %v1040 = vunpack.c.h.b16 %v954
    %v1041 = vunpack.c.l.b16 %v955
    %v1042 = vunpack.c.h.b16 %v955
    %v1043 = vunpack.c.l.b16 %v956
    %v1044 = vunpack.c.h.b16 %v956
    %v1045 = vunpack.c.l.b16 %v957
    %v1046 = vunpack.c.h.b16 %v957
    %v1047 = vunpack.c.l.b16 %v958
    %v1048 = vunpack.c.h.b16 %v958
    %v1049 = vunpack.c.l.b16 %v959
    %v1050 = vunpack.c.h.b16 %v959
    %v1051 = vunpack.c.l.b16 %v960
    %v1052 = vunpack.c.h.b16 %v960
    %v1053 = vunpack.c.l.b16 %v961
    %v1054 = vunpack.c.h.b16 %v961
    %v1055 = vunpack.c.l.b16 %v962
    %v1056 = vunpack.c.h.b16 %v962
    %v1057 = vunpack.c.l.b16 %v963
    %v1058 = vunpack.c.h.b16 %v963
    %v1059 = vunpack.c.l.b16 %v964
    %v1060 = vunpack.c.h.b16 %v964
    %v1061 = vunpack.c.l.b16 %v965
    %v1062 = vunpack.c.h.b16 %v965
    %v1063 = vunpack.c.l.b16 %v966
    %v1064 = vunpack.c.h.b16 %v966
    %v1065 = vunpack.c.l.b16 %v967
    %v1066 = vunpack.c.h.b16 %v967
    %v1067 = vunpack.c.l.b16 %v968
    %v1068 = vunpack.c.h.b16 %v968
    %v1069 = vunpack.c.l.b16 %v969
    %v1070 = vunpack.c.h.b16 %v969
    %v1071 = vunpack.c.l.b16 %v970
    %v1072 = vunpack.c.h.b16 %v970
    %v1073 = vunpack.c.l.b16 %v971
    %v1074 = vunpack.c.h.b16 %v971
    %v1075 = vunpack.c.l.b16 %v972
    %v1076 = vunpack.c.h.b16 %v972
    %v1077 = vunpack.c.l.b16 %v973
    %v1078 = vunpack.c.h.b16 %v973
    %v1079 = vunpack.c.l.b16 %v974
    %v1080 = vunpack.c.h.b16 %v974
    %v1081 = vunpack.c.l.b16 %v975
    %v1082 = vunpack.c.h.b16 %v975
    %v1083 = vunpack.c.l.b16 %v976
    %v1084 = vunpack.c.h.b16 %v976
    %v1085 = vpack.c.b16 %v1023, %v1021
    %v1086 = vpack.c.b16 %v1024, %v1022
    %v1087 = vpack.c.b16 %v1027, %v1025
    %v1088 = vpack.c.b16 %v1028, %v1026
    %v1089 = vpack.c.b16 %v1031, %v1029
    %v1090 = vpack.c.b16 %v1032, %v1030
    %v1091 = vpack.c.b16 %v1035, %v1033
    %v1092 = vpack.c.b16 %v1036, %v1034
    %v1093 = vpack.c.b16 %v1039, %v1037
    %v1094 = vpack.c.b16 %v1040, %v1038
    %v1095 = vpack.c.b16 %v1043, %v1041
    %v1096 = vpack.c.b16 %v1044, %v1042
    %v1097 = vpack.c.b16 %v1047, %v1045
    %v1098 = vpack.c.b16 %v1048, %v1046
    %v1099 = vpack.c.b16 %v1051, %v1049
    %v1100 = vpack.c.b16 %v1052, %v1050
    %v1101 = vpack.c.b16 %v1055, %v1053
    %v1102 = vpack.c.b16 %v1056, %v1054
    %v1103 = vpack.c.b16 %v1059, %v1057
    %v1104 = vpack.c.b16 %v1060, %v1058
    %v1105 = vpack.c.b16 %v1063, %v1061
    %v1106 = vpack.c.b16 %v1064, %v1062
    %v1107 = vpack.c.b16 %v1067, %v1065
    %v1108 = vpack.c.b16 %v1068, %v1066
    %v1109 = vpack.c.b16 %v1071, %v1069
    %v1110 = vpack.c.b16 %v1072, %v1070
    %v1111 = vpack.c.b16 %v1075, %v1073
    %v1112 = vpack.c.b16 %v1076, %v1074
    %v1113 = vpack.c.b16 %v1079, %v1077
    %v1114 = vpack.c.b16 %v1080, %v1078
    %v1115 = vpack.c.b16 %v1083, %v1081
    %v1116 = vpack.c.b16 %v1084, %v1082
    %1149 = vmatprep.subr.bf16.mxu0 %v1086
    %1150 = vmatpush1.bf16.msra.mxu0 %v1085
    %1151 = vmatprep.subr.bf16.mxu0 %v1088
    %1152 = vmatpush1.bf16.msra.mxu0 %v1087
    %1153 = vmatprep.subr.bf16.mxu0 %v1090
    %1154 = vmatpush1.bf16.msra.mxu0 %v1089
    %1155 = vmatprep.subr.bf16.mxu0 %v1092
    %1156 = vmatpush1.bf16.msra.mxu0 %v1091
    %1157 = vmatprep.subr.bf16.mxu0 %v1094
    %1158 = vmatpush1.bf16.msra.mxu0 %v1093
    %1159 = vmatprep.subr.bf16.mxu0 %v1096
    %1160 = vmatpush1.bf16.msra.mxu0 %v1095
    %1161 = vmatprep.subr.bf16.mxu0 %v1098
    %1162 = vmatpush1.bf16.msra.mxu0 %v1097
    %1163 = vmatprep.subr.bf16.mxu0 %v1100
    %1164 = vmatpush1.bf16.msra.mxu0 %v1099
    %1165 = vmatprep.subr.bf16.mxu0 %v1102
    %1166 = vmatpush1.bf16.msra.mxu0 %v1101
    %1167 = vmatprep.subr.bf16.mxu0 %v1104
    %1168 = vmatpush1.bf16.msra.mxu0 %v1103
    %1169 = vmatprep.subr.bf16.mxu0 %v1106
    %1170 = vmatpush1.bf16.msra.mxu0 %v1105
    %1171 = vmatprep.subr.bf16.mxu0 %v1108
    %1172 = vmatpush1.bf16.msra.mxu0 %v1107
    %1173 = vmatprep.subr.bf16.mxu0 %v1110
    %1174 = vmatpush1.bf16.msra.mxu0 %v1109
    %1175 = vmatprep.subr.bf16.mxu0 %v1112
    %1176 = vmatpush1.bf16.msra.mxu0 %v1111
    %1177 = vmatprep.subr.bf16.mxu0 %v1114
    %1178 = vmatpush1.bf16.msra.mxu0 %v1113
    %1179 = vmatprep.subr.bf16.mxu0 %v1116
    %1180 = vmatpush1.bf16.msra.mxu0 %v1115
    %1181 = vmatprep.mubr.bf16.mxu0 %v930
    %1182 = vmatmul.mubr.bf16.gmra.mrb[0].mxu0 %v929
    %v1183 = vpop.f32.mrb[0].mxu0
    %v1184 = vadd.f32 %v982, %v1183
    %v1185 = vpop.f32.mrb[0].mxu0
    %v1186 = vadd.f32 %v986, %v1185
    %v1187 = vpop.f32.mrb[0].mxu0
    %v1188 = vadd.f32 %v982, %v1187
    %v1189 = vpop.f32.mrb[0].mxu0
    %v1190 = vadd.f32 %v986, %v1189
    %1191 = vmatprep.mubr.bf16.mxu0 %v932
    %1192 = vmatmul.mubr.bf16.gmra.mrb[0].mxu0 %v931
    %v1193 = vpop.f32.mrb[0].mxu0
    %v1194 = vadd.f32 %v982, %v1193
    %v1195 = vpop.f32.mrb[0].mxu0
    %v1196 = vadd.f32 %v986, %v1195
    %v1197 = vpop.f32.mrb[0].mxu0
    %v1198 = vadd.f32 %v982, %v1197
    %v1199 = vpop.f32.mrb[0].mxu0
    %v1200 = vadd.f32 %v986, %v1199
    %1201 = vmatprep.mubr.bf16.mxu0 %v934
    %1202 = vmatmul.mubr.bf16.gmra.mrb[0].mxu0 %v933
    %v1203 = vpop.f32.mrb[0].mxu0
    %v1204 = vadd.f32 %v982, %v1203
    %v1205 = vpop.f32.mrb[0].mxu0
    %v1206 = vadd.f32 %v986, %v1205
    %v1207 = vpop.f32.mrb[0].mxu0
    %v1208 = vadd.f32 %v982, %v1207
    %v1209 = vpop.f32.mrb[0].mxu0
    %v1210 = vadd.f32 %v986, %v1209
    %1211 = vmatprep.mubr.bf16.mxu0 %v936
    %1212 = vmatmul.mubr.bf16.gmra.mrb[0].mxu0 %v935
    %v1213 = vpop.f32.mrb[0].mxu0
    %v1214 = vadd.f32 %v982, %v1213
    %v1215 = vpop.f32.mrb[0].mxu0
    %v1216 = vadd.f32 %v986, %v1215
    %v1217 = vpop.f32.mrb[0].mxu0
    %v1218 = vadd.f32 %v982, %v1217
    %v1219 = vpop.f32.mrb[0].mxu0
    %v1220 = vadd.f32 %v986, %v1219
    %1221 = vmatprep.mubr.bf16.mxu0 %v938
    %1222 = vmatmul.mubr.bf16.gmra.mrb[0].mxu0 %v937
    %v1223 = vpop.f32.mrb[0].mxu0
    %v1224 = vadd.f32 %v982, %v1223
    %v1225 = vpop.f32.mrb[0].mxu0
    %v1226 = vadd.f32 %v986, %v1225
    %v1227 = vpop.f32.mrb[0].mxu0
    %v1228 = vadd.f32 %v982, %v1227
    %v1229 = vpop.f32.mrb[0].mxu0
    %v1230 = vadd.f32 %v986, %v1229
    %1231 = vmatprep.mubr.bf16.mxu0 %v940
    %1232 = vmatmul.mubr.bf16.gmra.mrb[0].mxu0 %v939
    %v1233 = vpop.f32.mrb[0].mxu0
    %v1234 = vadd.f32 %v982, %v1233
    %v1235 = vpop.f32.mrb[0].mxu0
    %v1236 = vadd.f32 %v986, %v1235
    %v1237 = vpop.f32.mrb[0].mxu0
    %v1238 = vadd.f32 %v982, %v1237
    %v1239 = vpop.f32.mrb[0].mxu0
    %v1240 = vadd.f32 %v986, %v1239
    %1241 = vmatprep.mubr.bf16.mxu0 %v942
    %1242 = vmatmul.mubr.bf16.gmra.mrb[0].mxu0 %v941
    %v1243 = vpop.f32.mrb[0].mxu0
    %v1244 = vadd.f32 %v982, %v1243
    %v1245 = vpop.f32.mrb[0].mxu0
    %v1246 = vadd.f32 %v986, %v1245
    %v1247 = vpop.f32.mrb[0].mxu0
    %v1248 = vadd.f32 %v982, %v1247
    %v1249 = vpop.f32.mrb[0].mxu0
    %v1250 = vadd.f32 %v986, %v1249
    %1251 = vmatprep.mubr.bf16.mxu0 %v944
    %1252 = vmatmul.mubr.bf16.gmra.mrb[0].mxu0 %v943
    %v1253 = vpop.f32.mrb[0].mxu0
    %v1254 = vadd.f32 %v982, %v1253
    %v1255 = vpop.f32.mrb[0].mxu0
    %v1256 = vadd.f32 %v986, %v1255
    %v1257 = vpop.f32.mrb[0].mxu0
    %v1258 = vadd.f32 %v982, %v1257
    %v1259 = vpop.f32.mrb[0].mxu0
    %v1260 = vadd.f32 %v986, %v1259
    %1261 = vdwg.mxu0
    %v1262 = vmax.f32 %v1184, 0.0
    %v1263 = vmax.f32 %v1186, 0.0
    %v1264 = vmax.f32 %v1188, 0.0
    %v1265 = vmax.f32 %v1190, 0.0
    %v1266 = vmax.f32 %v1194, 0.0
    %v1267 = vmax.f32 %v1196, 0.0
    %v1268 = vmax.f32 %v1198, 0.0
    %v1269 = vmax.f32 %v1200, 0.0
    %v1270 = vmax.f32 %v1204, 0.0
    %v1271 = vmax.f32 %v1206, 0.0
    %v1272 = vmax.f32 %v1208, 0.0
    %v1273 = vmax.f32 %v1210, 0.0
    %v1274 = vmax.f32 %v1214, 0.0
    %v1275 = vmax.f32 %v1216, 0.0
    %v1276 = vmax.f32 %v1218, 0.0
    %v1277 = vmax.f32 %v1220, 0.0
    %v1278 = vmax.f32 %v1224, 0.0
    %v1279 = vmax.f32 %v1226, 0.0
    %v1280 = vmax.f32 %v1228, 0.0
    %v1281 = vmax.f32 %v1230, 0.0
    %v1282 = vmax.f32 %v1234, 0.0
    %v1283 = vmax.f32 %v1236, 0.0
    %v1284 = vmax.f32 %v1238, 0.0
    %v1285 = vmax.f32 %v1240, 0.0
    %v1286 = vmax.f32 %v1244, 0.0
    %v1287 = vmax.f32 %v1246, 0.0
    %v1288 = vmax.f32 %v1248, 0.0
    %v1289 = vmax.f32 %v1250, 0.0
    %v1290 = vmax.f32 %v1254, 0.0
    %v1291 = vmax.f32 %v1256, 0.0
    %v1292 = vmax.f32 %v1258, 0.0
    %v1293 = vmax.f32 %v1260, 0.0
    %v1294 = vld [vmem:[#allocation6] sm:$0xff]
    %v1295 = vld [vmem:[#allocation6 + $0x8] sm:$0xff]
    %v1296 = vld [vmem:[#allocation6 + $0x10] sm:$0xff]
    %v1297 = vld [vmem:[#allocation6 + $0x18] sm:$0xff]
    %v1298 = vld [vmem:[#allocation6 + $0x20] sm:$0xff]
    %v1299 = vld [vmem:[#allocation6 + $0x28] sm:$0xff]
    %v1300 = vld [vmem:[#allocation6 + $0x30] sm:$0xff]
    %v1301 = vld [vmem:[#allocation6 + $0x38] sm:$0xff]
    %v1302 = vld [vmem:[#allocation6 + $0x40] sm:$0xff]
    %v1303 = vld [vmem:[#allocation6 + $0x48] sm:$0xff]
    %v1304 = vld [vmem:[#allocation6 + $0x50] sm:$0xff]
    %v1305 = vld [vmem:[#allocation6 + $0x58] sm:$0xff]
    %v1306 = vld [vmem:[#allocation6 + $0x60] sm:$0xff]
    %v1307 = vld [vmem:[#allocation6 + $0x68] sm:$0xff]
    %v1308 = vld [vmem:[#allocation6 + $0x70] sm:$0xff]
    %v1309 = vld [vmem:[#allocation6 + $0x78] sm:$0xff]
    %v1310 = vld [vmem:[#allocation6 + $0x80] sm:$0xff]
    %v1311 = vld [vmem:[#allocation6 + $0x88] sm:$0xff]
    %v1312 = vld [vmem:[#allocation6 + $0x90] sm:$0xff]
    %v1313 = vld [vmem:[#allocation6 + $0x98] sm:$0xff]
    %v1314 = vld [vmem:[#allocation6 + $0xa0] sm:$0xff]
    %v1315 = vld [vmem:[#allocation6 + $0xa8] sm:$0xff]
    %v1316 = vld [vmem:[#allocation6 + $0xb0] sm:$0xff]
    %v1317 = vld [vmem:[#allocation6 + $0xb8] sm:$0xff]
    %v1318 = vld [vmem:[#allocation6 + $0xc0] sm:$0xff]
    %v1319 = vld [vmem:[#allocation6 + $0xc8] sm:$0xff]
    %v1320 = vld [vmem:[#allocation6 + $0xd0] sm:$0xff]
    %v1321 = vld [vmem:[#allocation6 + $0xd8] sm:$0xff]
    %v1322 = vld [vmem:[#allocation6 + $0xe0] sm:$0xff]
    %v1323 = vld [vmem:[#allocation6 + $0xe8] sm:$0xff]
    %v1324 = vld [vmem:[#allocation6 + $0xf0] sm:$0xff]
    %v1325 = vld [vmem:[#allocation6 + $0xf8] sm:$0xff]
    %v1326 = vld [vmem:[%s8] sm:$0x3]
    %v1328 = vlaneseq
    %v1329 = vshrl.u32 %v1328, 7
    %v1330 = vsub.s32 0, %v1329
    %v1331 = vrot.slane %v1326, %v1330
    %v1332 = vlaneseq
    %v1333 = vshrl.u32 %v1332, 7
    %v1334 = vsub.s32 1, %v1333
    %v1335 = vrot.slane %v1326, %v1334
    %v1370 = vunpack.c.l.b16 %v1294
    %v1371 = vunpack.c.h.b16 %v1294
    %v1372 = vunpack.c.l.b16 %v1295
    %v1373 = vunpack.c.h.b16 %v1295
    %v1374 = vunpack.c.l.b16 %v1296
    %v1375 = vunpack.c.h.b16 %v1296
    %v1376 = vunpack.c.l.b16 %v1297
    %v1377 = vunpack.c.h.b16 %v1297
    %v1378 = vunpack.c.l.b16 %v1298
    %v1379 = vunpack.c.h.b16 %v1298
    %v1380 = vunpack.c.l.b16 %v1299
    %v1381 = vunpack.c.h.b16 %v1299
    %v1382 = vunpack.c.l.b16 %v1300
    %v1383 = vunpack.c.h.b16 %v1300
    %v1384 = vunpack.c.l.b16 %v1301
    %v1385 = vunpack.c.h.b16 %v1301
    %v1386 = vunpack.c.l.b16 %v1302
    %v1387 = vunpack.c.h.b16 %v1302
    %v1388 = vunpack.c.l.b16 %v1303
    %v1389 = vunpack.c.h.b16 %v1303
    %v1390 = vunpack.c.l.b16 %v1304
    %v1391 = vunpack.c.h.b16 %v1304
    %v1392 = vunpack.c.l.b16 %v1305
    %v1393 = vunpack.c.h.b16 %v1305
    %v1394 = vunpack.c.l.b16 %v1306
    %v1395 = vunpack.c.h.b16 %v1306
    %v1396 = vunpack.c.l.b16 %v1307
    %v1397 = vunpack.c.h.b16 %v1307
    %v1398 = vunpack.c.l.b16 %v1308
    %v1399 = vunpack.c.h.b16 %v1308
    %v1400 = vunpack.c.l.b16 %v1309
    %v1401 = vunpack.c.h.b16 %v1309
    %v1402 = vunpack.c.l.b16 %v1310
    %v1403 = vunpack.c.h.b16 %v1310
    %v1404 = vunpack.c.l.b16 %v1311
    %v1405 = vunpack.c.h.b16 %v1311
    %v1406 = vunpack.c.l.b16 %v1312
    %v1407 = vunpack.c.h.b16 %v1312
    %v1408 = vunpack.c.l.b16 %v1313
    %v1409 = vunpack.c.h.b16 %v1313
    %v1410 = vunpack.c.l.b16 %v1314
    %v1411 = vunpack.c.h.b16 %v1314
    %v1412 = vunpack.c.l.b16 %v1315
    %v1413 = vunpack.c.h.b16 %v1315
    %v1414 = vunpack.c.l.b16 %v1316
    %v1415 = vunpack.c.h.b16 %v1316
    %v1416 = vunpack.c.l.b16 %v1317
    %v1417 = vunpack.c.h.b16 %v1317
    %v1418 = vunpack.c.l.b16 %v1318
    %v1419 = vunpack.c.h.b16 %v1318
    %v1420 = vunpack.c.l.b16 %v1319
    %v1421 = vunpack.c.h.b16 %v1319
    %v1422 = vunpack.c.l.b16 %v1320
    %v1423 = vunpack.c.h.b16 %v1320
    %v1424 = vunpack.c.l.b16 %v1321
    %v1425 = vunpack.c.h.b16 %v1321
    %v1426 = vunpack.c.l.b16 %v1322
    %v1427 = vunpack.c.h.b16 %v1322
    %v1428 = vunpack.c.l.b16 %v1323
    %v1429 = vunpack.c.h.b16 %v1323
    %v1430 = vunpack.c.l.b16 %v1324
    %v1431 = vunpack.c.h.b16 %v1324
    %v1432 = vunpack.c.l.b16 %v1325
    %v1433 = vunpack.c.h.b16 %v1325
    %v1434 = vpack.c.b16 %v1372, %v1370
    %v1435 = vpack.c.b16 %v1373, %v1371
    %v1436 = vpack.c.b16 %v1376, %v1374
    %v1437 = vpack.c.b16 %v1377, %v1375
    %v1438 = vpack.c.b16 %v1380, %v1378
    %v1439 = vpack.c.b16 %v1381, %v1379
    %v1440 = vpack.c.b16 %v1384, %v1382
    %v1441 = vpack.c.b16 %v1385, %v1383
    %v1442 = vpack.c.b16 %v1388, %v1386
    %v1443 = vpack.c.b16 %v1389, %v1387
    %v1444 = vpack.c.b16 %v1392, %v1390
    %v1445 = vpack.c.b16 %v1393, %v1391
    %v1446 = vpack.c.b16 %v1396, %v1394
    %v1447 = vpack.c.b16 %v1397, %v1395
    %v1448 = vpack.c.b16 %v1400, %v1398
    %v1449 = vpack.c.b16 %v1401, %v1399
    %v1450 = vpack.c.b16 %v1404, %v1402
    %v1451 = vpack.c.b16 %v1405, %v1403
    %v1452 = vpack.c.b16 %v1408, %v1406
    %v1453 = vpack.c.b16 %v1409, %v1407
    %v1454 = vpack.c.b16 %v1412, %v1410
    %v1455 = vpack.c.b16 %v1413, %v1411
    %v1456 = vpack.c.b16 %v1416, %v1414
    %v1457 = vpack.c.b16 %v1417, %v1415
    %v1458 = vpack.c.b16 %v1420, %v1418
    %v1459 = vpack.c.b16 %v1421, %v1419
    %v1460 = vpack.c.b16 %v1424, %v1422
    %v1461 = vpack.c.b16 %v1425, %v1423
    %v1462 = vpack.c.b16 %v1428, %v1426
    %v1463 = vpack.c.b16 %v1429, %v1427
    %v1464 = vpack.c.b16 %v1432, %v1430
    %v1465 = vpack.c.b16 %v1433, %v1431
    %1498 = vmatprep.subr.bf16.mxu0 %v1435
    %1499 = vmatpush1.bf16.msra.mxu0 %v1434
    %1500 = vmatprep.subr.bf16.mxu0 %v1437
    %1501 = vmatpush1.bf16.msra.mxu0 %v1436
    %1502 = vmatprep.subr.bf16.mxu0 %v1439
    %1503 = vmatpush1.bf16.msra.mxu0 %v1438
    %1504 = vmatprep.subr.bf16.mxu0 %v1441
    %1505 = vmatpush1.bf16.msra.mxu0 %v1440
    %1506 = vmatprep.subr.bf16.mxu0 %v1443
    %1507 = vmatpush1.bf16.msra.mxu0 %v1442
    %1508 = vmatprep.subr.bf16.mxu0 %v1445
    %1509 = vmatpush1.bf16.msra.mxu0 %v1444
    %1510 = vmatprep.subr.bf16.mxu0 %v1447
    %1511 = vmatpush1.bf16.msra.mxu0 %v1446
    %1512 = vmatprep.subr.bf16.mxu0 %v1449
    %1513 = vmatpush1.bf16.msra.mxu0 %v1448
    %1514 = vmatprep.subr.bf16.mxu0 %v1451
    %1515 = vmatpush1.bf16.msra.mxu0 %v1450
    %1516 = vmatprep.subr.bf16.mxu0 %v1453
    %1517 = vmatpush1.bf16.msra.mxu0 %v1452
    %1518 = vmatprep.subr.bf16.mxu0 %v1455
    %1519 = vmatpush1.bf16.msra.mxu0 %v1454
    %1520 = vmatprep.subr.bf16.mxu0 %v1457
    %1521 = vmatpush1.bf16.msra.mxu0 %v1456
    %1522 = vmatprep.subr.bf16.mxu0 %v1459
    %1523 = vmatpush1.bf16.msra.mxu0 %v1458
    %1524 = vmatprep.subr.bf16.mxu0 %v1461
    %1525 = vmatpush1.bf16.msra.mxu0 %v1460
    %1526 = vmatprep.subr.bf16.mxu0 %v1463
    %1527 = vmatpush1.bf16.msra.mxu0 %v1462
    %1528 = vmatprep.subr.bf16.mxu0 %v1465
    %1529 = vmatpush1.bf16.msra.mxu0 %v1464
    %1530 = vmatprep.mubr.bf16.mxu0 %v551
    %1531 = vmatmul.mubr.bf16.gmra.mrb[0].mxu0 %v550
    %v1532 = vpop.f32.mrb[0].mxu0
    %v1533 = vadd.f32 %v1331, %v1532
    %v1534 = vpop.f32.mrb[0].mxu0
    %v1535 = vadd.f32 %v1335, %v1534
    %v1536 = vpop.f32.mrb[0].mxu0
    %v1537 = vadd.f32 %v1331, %v1536
    %v1538 = vpop.f32.mrb[0].mxu0
    %v1539 = vadd.f32 %v1335, %v1538
    %1540 = vmatprep.mubr.bf16.mxu0 %v555
    %1541 = vmatmul.mubr.bf16.gmra.mrb[0].mxu0 %v554
    %v1542 = vpop.f32.mrb[0].mxu0
    %v1543 = vadd.f32 %v1331, %v1542
    %v1544 = vpop.f32.mrb[0].mxu0
    %v1545 = vadd.f32 %v1335, %v1544
    %v1546 = vpop.f32.mrb[0].mxu0
    %v1547 = vadd.f32 %v1331, %v1546
    %v1548 = vpop.f32.mrb[0].mxu0
    %v1549 = vadd.f32 %v1335, %v1548
    %1550 = vmatprep.mubr.bf16.mxu0 %v559
    %1551 = vmatmul.mubr.bf16.gmra.mrb[0].mxu0 %v558
    %v1552 = vpop.f32.mrb[0].mxu0
    %v1553 = vadd.f32 %v1331, %v1552
    %v1554 = vpop.f32.mrb[0].mxu0
    %v1555 = vadd.f32 %v1335, %v1554
    %v1556 = vpop.f32.mrb[0].mxu0
    %v1557 = vadd.f32 %v1331, %v1556
    %v1558 = vpop.f32.mrb[0].mxu0
    %v1559 = vadd.f32 %v1335, %v1558
    %1560 = vmatprep.mubr.bf16.mxu0 %v563
    %1561 = vmatmul.mubr.bf16.gmra.mrb[0].mxu0 %v562
    %v1562 = vpop.f32.mrb[0].mxu0
    %v1563 = vadd.f32 %v1331, %v1562
    %v1564 = vpop.f32.mrb[0].mxu0
    %v1565 = vadd.f32 %v1335, %v1564
    %v1566 = vpop.f32.mrb[0].mxu0
    %v1567 = vadd.f32 %v1331, %v1566
    %v1568 = vpop.f32.mrb[0].mxu0
    %v1569 = vadd.f32 %v1335, %v1568
    %1570 = vmatprep.mubr.bf16.mxu0 %v567
    %1571 = vmatmul.mubr.bf16.gmra.mrb[0].mxu0 %v566
    %v1572 = vpop.f32.mrb[0].mxu0
    %v1573 = vadd.f32 %v1331, %v1572
    %v1574 = vpop.f32.mrb[0].mxu0
    %v1575 = vadd.f32 %v1335, %v1574
    %v1576 = vpop.f32.mrb[0].mxu0
    %v1577 = vadd.f32 %v1331, %v1576
    %v1578 = vpop.f32.mrb[0].mxu0
    %v1579 = vadd.f32 %v1335, %v1578
    %1580 = vmatprep.mubr.bf16.mxu0 %v571
    %1581 = vmatmul.mubr.bf16.gmra.mrb[0].mxu0 %v570
    %v1582 = vpop.f32.mrb[0].mxu0
    %v1583 = vadd.f32 %v1331, %v1582
    %v1584 = vpop.f32.mrb[0].mxu0
    %v1585 = vadd.f32 %v1335, %v1584
    %v1586 = vpop.f32.mrb[0].mxu0
    %v1587 = vadd.f32 %v1331, %v1586
    %v1588 = vpop.f32.mrb[0].mxu0
    %v1589 = vadd.f32 %v1335, %v1588
    %1590 = vmatprep.mubr.bf16.mxu0 %v575
    %1591 = vmatmul.mubr.bf16.gmra.mrb[0].mxu0 %v574
    %v1592 = vpop.f32.mrb[0].mxu0
    %v1593 = vadd.f32 %v1331, %v1592
    %v1594 = vpop.f32.mrb[0].mxu0
    %v1595 = vadd.f32 %v1335, %v1594
    %v1596 = vpop.f32.mrb[0].mxu0
    %v1597 = vadd.f32 %v1331, %v1596
    %v1598 = vpop.f32.mrb[0].mxu0
    %v1599 = vadd.f32 %v1335, %v1598
    %1600 = vmatprep.mubr.bf16.mxu0 %v579
    %1601 = vmatmul.mubr.bf16.gmra.mrb[0].mxu0 %v578
    %v1602 = vpop.f32.mrb[0].mxu0
    %v1603 = vadd.f32 %v1331, %v1602
    %v1604 = vpop.f32.mrb[0].mxu0
    %v1605 = vadd.f32 %v1335, %v1604
    %v1606 = vpop.f32.mrb[0].mxu0
    %v1607 = vadd.f32 %v1331, %v1606
    %v1608 = vpop.f32.mrb[0].mxu0
    %v1609 = vadd.f32 %v1335, %v1608
    %1610 = vdwg.mxu0
    %v1611 = vmax.f32 %v1533, 0.0
    %v1612 = vmax.f32 %v1535, 0.0
    %v1613 = vmax.f32 %v1537, 0.0
    %v1614 = vmax.f32 %v1539, 0.0
    %v1615 = vmax.f32 %v1543, 0.0
    %v1616 = vmax.f32 %v1545, 0.0
    %v1617 = vmax.f32 %v1547, 0.0
    %v1618 = vmax.f32 %v1549, 0.0
    %v1619 = vmax.f32 %v1553, 0.0
    %v1620 = vmax.f32 %v1555, 0.0
    %v1621 = vmax.f32 %v1557, 0.0
    %v1622 = vmax.f32 %v1559, 0.0
    %v1623 = vmax.f32 %v1563, 0.0
    %v1624 = vmax.f32 %v1565, 0.0
    %v1625 = vmax.f32 %v1567, 0.0
    %v1626 = vmax.f32 %v1569, 0.0
    %v1627 = vmax.f32 %v1573, 0.0
    %v1628 = vmax.f32 %v1575, 0.0
    %v1629 = vmax.f32 %v1577, 0.0
    %v1630 = vmax.f32 %v1579, 0.0
    %v1631 = vmax.f32 %v1583, 0.0
    %v1632 = vmax.f32 %v1585, 0.0
    %v1633 = vmax.f32 %v1587, 0.0
    %v1634 = vmax.f32 %v1589, 0.0
    %v1635 = vmax.f32 %v1593, 0.0
    %v1636 = vmax.f32 %v1595, 0.0
    %v1637 = vmax.f32 %v1597, 0.0
    %v1638 = vmax.f32 %v1599, 0.0
    %v1639 = vmax.f32 %v1603, 0.0
    %v1640 = vmax.f32 %v1605, 0.0
    %v1641 = vmax.f32 %v1607, 0.0
    %v1642 = vmax.f32 %v1609, 0.0
    %v1643 = vpack.c.bf16 %v1613, %v1611
    %v1644 = vpack.c.bf16 %v1614, %v1612
    %v1645 = vpack.c.bf16 %v1617, %v1615
    %v1646 = vpack.c.bf16 %v1618, %v1616
    %v1647 = vpack.c.bf16 %v1621, %v1619
    %v1648 = vpack.c.bf16 %v1622, %v1620
    %v1649 = vpack.c.bf16 %v1625, %v1623
    %v1650 = vpack.c.bf16 %v1626, %v1624
    %v1651 = vpack.c.bf16 %v1629, %v1627
    %v1652 = vpack.c.bf16 %v1630, %v1628
    %v1653 = vpack.c.bf16 %v1633, %v1631
    %v1654 = vpack.c.bf16 %v1634, %v1632
    %v1655 = vpack.c.bf16 %v1637, %v1635
    %v1656 = vpack.c.bf16 %v1638, %v1636
    %v1657 = vpack.c.bf16 %v1641, %v1639
    %v1658 = vpack.c.bf16 %v1642, %v1640
    %v1659 = vld [vmem:[#allocation7] sm:$0xff]
    %v1660 = vld [vmem:[#allocation7 + $0x8] sm:$0xff]
    %v1661 = vld [vmem:[#allocation7 + $0x10] sm:$0xff]
    %v1662 = vld [vmem:[#allocation7 + $0x18] sm:$0xff]
    %v1663 = vld [vmem:[#allocation7 + $0x20] sm:$0xff]
    %v1664 = vld [vmem:[#allocation7 + $0x28] sm:$0xff]
    %v1665 = vld [vmem:[#allocation7 + $0x30] sm:$0xff]
    %v1666 = vld [vmem:[#allocation7 + $0x38] sm:$0xff]
    %v1667 = vld [vmem:[#allocation7 + $0x40] sm:$0xff]
    %v1668 = vld [vmem:[#allocation7 + $0x48] sm:$0xff]
    %v1669 = vld [vmem:[#allocation7 + $0x50] sm:$0xff]
    %v1670 = vld [vmem:[#allocation7 + $0x58] sm:$0xff]
    %v1671 = vld [vmem:[#allocation7 + $0x60] sm:$0xff]
    %v1672 = vld [vmem:[#allocation7 + $0x68] sm:$0xff]
    %v1673 = vld [vmem:[#allocation7 + $0x70] sm:$0xff]
    %v1674 = vld [vmem:[#allocation7 + $0x78] sm:$0xff]
    %v1675 = vld [vmem:[#allocation7 + $0x80] sm:$0xff]
    %v1676 = vld [vmem:[#allocation7 + $0x88] sm:$0xff]
    %v1677 = vld [vmem:[#allocation7 + $0x90] sm:$0xff]
    %v1678 = vld [vmem:[#allocation7 + $0x98] sm:$0xff]
    %v1679 = vld [vmem:[#allocation7 + $0xa0] sm:$0xff]
    %v1680 = vld [vmem:[#allocation7 + $0xa8] sm:$0xff]
    %v1681 = vld [vmem:[#allocation7 + $0xb0] sm:$0xff]
    %v1682 = vld [vmem:[#allocation7 + $0xb8] sm:$0xff]
    %v1683 = vld [vmem:[#allocation7 + $0xc0] sm:$0xff]
    %v1684 = vld [vmem:[#allocation7 + $0xc8] sm:$0xff]
    %v1685 = vld [vmem:[#allocation7 + $0xd0] sm:$0xff]
    %v1686 = vld [vmem:[#allocation7 + $0xd8] sm:$0xff]
    %v1687 = vld [vmem:[#allocation7 + $0xe0] sm:$0xff]
    %v1688 = vld [vmem:[#allocation7 + $0xe8] sm:$0xff]
    %v1689 = vld [vmem:[#allocation7 + $0xf0] sm:$0xff]
    %v1690 = vld [vmem:[#allocation7 + $0xf8] sm:$0xff]
    %v1691 = vld [vmem:[%s10] sm:$0x3]
    %v1693 = vlaneseq
    %v1694 = vshrl.u32 %v1693, 7
    %v1695 = vsub.s32 0, %v1694
    %v1696 = vrot.slane %v1691, %v1695
    %v1697 = vlaneseq
    %v1698 = vshrl.u32 %v1697, 7
    %v1699 = vsub.s32 1, %v1698
    %v1700 = vrot.slane %v1691, %v1699
    %v1735 = vunpack.c.l.b16 %v1659
    %v1736 = vunpack.c.h.b16 %v1659
    %v1737 = vunpack.c.l.b16 %v1660
    %v1738 = vunpack.c.h.b16 %v1660
    %v1739 = vunpack.c.l.b16 %v1661
    %v1740 = vunpack.c.h.b16 %v1661
    %v1741 = vunpack.c.l.b16 %v1662
    %v1742 = vunpack.c.h.b16 %v1662
    %v1743 = vunpack.c.l.b16 %v1663
    %v1744 = vunpack.c.h.b16 %v1663
    %v1745 = vunpack.c.l.b16 %v1664
    %v1746 = vunpack.c.h.b16 %v1664
    %v1747 = vunpack.c.l.b16 %v1665
    %v1748 = vunpack.c.h.b16 %v1665
    %v1749 = vunpack.c.l.b16 %v1666
    %v1750 = vunpack.c.h.b16 %v1666
    %v1751 = vunpack.c.l.b16 %v1667
    %v1752 = vunpack.c.h.b16 %v1667
    %v1753 = vunpack.c.l.b16 %v1668
    %v1754 = vunpack.c.h.b16 %v1668
    %v1755 = vunpack.c.l.b16 %v1669
    %v1756 = vunpack.c.h.b16 %v1669
    %v1757 = vunpack.c.l.b16 %v1670
    %v1758 = vunpack.c.h.b16 %v1670
    %v1759 = vunpack.c.l.b16 %v1671
    %v1760 = vunpack.c.h.b16 %v1671
    %v1761 = vunpack.c.l.b16 %v1672
    %v1762 = vunpack.c.h.b16 %v1672
    %v1763 = vunpack.c.l.b16 %v1673
    %v1764 = vunpack.c.h.b16 %v1673
    %v1765 = vunpack.c.l.b16 %v1674
    %v1766 = vunpack.c.h.b16 %v1674
    %v1767 = vunpack.c.l.b16 %v1675
    %v1768 = vunpack.c.h.b16 %v1675
    %v1769 = vunpack.c.l.b16 %v1676
    %v1770 = vunpack.c.h.b16 %v1676
    %v1771 = vunpack.c.l.b16 %v1677
    %v1772 = vunpack.c.h.b16 %v1677
    %v1773 = vunpack.c.l.b16 %v1678
    %v1774 = vunpack.c.h.b16 %v1678
    %v1775 = vunpack.c.l.b16 %v1679
    %v1776 = vunpack.c.h.b16 %v1679
    %v1777 = vunpack.c.l.b16 %v1680
    %v1778 = vunpack.c.h.b16 %v1680
    %v1779 = vunpack.c.l.b16 %v1681
    %v1780 = vunpack.c.h.b16 %v1681
    %v1781 = vunpack.c.l.b16 %v1682
    %v1782 = vunpack.c.h.b16 %v1682
    %v1783 = vunpack.c.l.b16 %v1683
    %v1784 = vunpack.c.h.b16 %v1683
    %v1785 = vunpack.c.l.b16 %v1684
    %v1786 = vunpack.c.h.b16 %v1684
    %v1787 = vunpack.c.l.b16 %v1685
    %v1788 = vunpack.c.h.b16 %v1685
    %v1789 = vunpack.c.l.b16 %v1686
    %v1790 = vunpack.c.h.b16 %v1686
    %v1791 = vunpack.c.l.b16 %v1687
    %v1792 = vunpack.c.h.b16 %v1687
    %v1793 = vunpack.c.l.b16 %v1688
    %v1794 = vunpack.c.h.b16 %v1688
    %v1795 = vunpack.c.l.b16 %v1689
    %v1796 = vunpack.c.h.b16 %v1689
    %v1797 = vunpack.c.l.b16 %v1690
    %v1798 = vunpack.c.h.b16 %v1690
    %v1799 = vpack.c.b16 %v1737, %v1735
    %v1800 = vpack.c.b16 %v1738, %v1736
    %v1801 = vpack.c.b16 %v1741, %v1739
    %v1802 = vpack.c.b16 %v1742, %v1740
    %v1803 = vpack.c.b16 %v1745, %v1743
    %v1804 = vpack.c.b16 %v1746, %v1744
    %v1805 = vpack.c.b16 %v1749, %v1747
    %v1806 = vpack.c.b16 %v1750, %v1748
    %v1807 = vpack.c.b16 %v1753, %v1751
    %v1808 = vpack.c.b16 %v1754, %v1752
    %v1809 = vpack.c.b16 %v1757, %v1755
    %v1810 = vpack.c.b16 %v1758, %v1756
    %v1811 = vpack.c.b16 %v1761, %v1759
    %v1812 = vpack.c.b16 %v1762, %v1760
    %v1813 = vpack.c.b16 %v1765, %v1763
    %v1814 = vpack.c.b16 %v1766, %v1764
    %v1815 = vpack.c.b16 %v1769, %v1767
    %v1816 = vpack.c.b16 %v1770, %v1768
    %v1817 = vpack.c.b16 %v1773, %v1771
    %v1818 = vpack.c.b16 %v1774, %v1772
    %v1819 = vpack.c.b16 %v1777, %v1775
    %v1820 = vpack.c.b16 %v1778, %v1776
    %v1821 = vpack.c.b16 %v1781, %v1779
    %v1822 = vpack.c.b16 %v1782, %v1780
    %v1823 = vpack.c.b16 %v1785, %v1783
    %v1824 = vpack.c.b16 %v1786, %v1784
    %v1825 = vpack.c.b16 %v1789, %v1787
    %v1826 = vpack.c.b16 %v1790, %v1788
    %v1827 = vpack.c.b16 %v1793, %v1791
    %v1828 = vpack.c.b16 %v1794, %v1792
    %v1829 = vpack.c.b16 %v1797, %v1795
    %v1830 = vpack.c.b16 %v1798, %v1796
    %1863 = vmatprep.subr.bf16.mxu0 %v1800
    %1864 = vmatpush1.bf16.msra.mxu0 %v1799
    %1865 = vmatprep.subr.bf16.mxu0 %v1802
    %1866 = vmatpush1.bf16.msra.mxu0 %v1801
    %1867 = vmatprep.subr.bf16.mxu0 %v1804
    %1868 = vmatpush1.bf16.msra.mxu0 %v1803
    %1869 = vmatprep.subr.bf16.mxu0 %v1806
    %1870 = vmatpush1.bf16.msra.mxu0 %v1805
    %1871 = vmatprep.subr.bf16.mxu0 %v1808
    %1872 = vmatpush1.bf16.msra.mxu0 %v1807
    %1873 = vmatprep.subr.bf16.mxu0 %v1810
    %1874 = vmatpush1.bf16.msra.mxu0 %v1809
    %1875 = vmatprep.subr.bf16.mxu0 %v1812
    %1876 = vmatpush1.bf16.msra.mxu0 %v1811
    %1877 = vmatprep.subr.bf16.mxu0 %v1814
    %1878 = vmatpush1.bf16.msra.mxu0 %v1813
    %1879 = vmatprep.subr.bf16.mxu0 %v1816
    %1880 = vmatpush1.bf16.msra.mxu0 %v1815
    %1881 = vmatprep.subr.bf16.mxu0 %v1818
    %1882 = vmatpush1.bf16.msra.mxu0 %v1817
    %1883 = vmatprep.subr.bf16.mxu0 %v1820
    %1884 = vmatpush1.bf16.msra.mxu0 %v1819
    %1885 = vmatprep.subr.bf16.mxu0 %v1822
    %1886 = vmatpush1.bf16.msra.mxu0 %v1821
    %1887 = vmatprep.subr.bf16.mxu0 %v1824
    %1888 = vmatpush1.bf16.msra.mxu0 %v1823
    %1889 = vmatprep.subr.bf16.mxu0 %v1826
    %1890 = vmatpush1.bf16.msra.mxu0 %v1825
    %1891 = vmatprep.subr.bf16.mxu0 %v1828
    %1892 = vmatpush1.bf16.msra.mxu0 %v1827
    %1893 = vmatprep.subr.bf16.mxu0 %v1830
    %1894 = vmatpush1.bf16.msra.mxu0 %v1829
    %1895 = vmatprep.mubr.bf16.mxu0 %v1644
    %1896 = vmatmul.mubr.bf16.gmra.mrb[0].mxu0 %v1643
    %v1897 = vpop.f32.mrb[0].mxu0
    %v1898 = vadd.f32 %v1696, %v1897
    %v1899 = vpop.f32.mrb[0].mxu0
    %v1900 = vadd.f32 %v1700, %v1899
    %v1901 = vpop.f32.mrb[0].mxu0
    %v1902 = vadd.f32 %v1696, %v1901
    %v1903 = vpop.f32.mrb[0].mxu0
    %v1904 = vadd.f32 %v1700, %v1903
    %1905 = vmatprep.mubr.bf16.mxu0 %v1646
    %1906 = vmatmul.mubr.bf16.gmra.mrb[0].mxu0 %v1645
    %v1907 = vpop.f32.mrb[0].mxu0
    %v1908 = vadd.f32 %v1696, %v1907
    %v1909 = vpop.f32.mrb[0].mxu0
    %v1910 = vadd.f32 %v1700, %v1909
    %v1911 = vpop.f32.mrb[0].mxu0
    %v1912 = vadd.f32 %v1696, %v1911
    %v1913 = vpop.f32.mrb[0].mxu0
    %v1914 = vadd.f32 %v1700, %v1913
    %1915 = vmatprep.mubr.bf16.mxu0 %v1648
    %1916 = vmatmul.mubr.bf16.gmra.mrb[0].mxu0 %v1647
    %v1917 = vpop.f32.mrb[0].mxu0
    %v1918 = vadd.f32 %v1696, %v1917
    %v1919 = vpop.f32.mrb[0].mxu0
    %v1920 = vadd.f32 %v1700, %v1919
    %v1921 = vpop.f32.mrb[0].mxu0
    %v1922 = vadd.f32 %v1696, %v1921
    %v1923 = vpop.f32.mrb[0].mxu0
    %v1924 = vadd.f32 %v1700, %v1923
    %1925 = vmatprep.mubr.bf16.mxu0 %v1650
    %1926 = vmatmul.mubr.bf16.gmra.mrb[0].mxu0 %v1649
    %v1927 = vpop.f32.mrb[0].mxu0
    %v1928 = vadd.f32 %v1696, %v1927
    %v1929 = vpop.f32.mrb[0].mxu0
    %v1930 = vadd.f32 %v1700, %v1929
    %v1931 = vpop.f32.mrb[0].mxu0
    %v1932 = vadd.f32 %v1696, %v1931
    %v1933 = vpop.f32.mrb[0].mxu0
    %v1934 = vadd.f32 %v1700, %v1933
    %1935 = vmatprep.mubr.bf16.mxu0 %v1652
    %1936 = vmatmul.mubr.bf16.gmra.mrb[0].mxu0 %v1651
    %v1937 = vpop.f32.mrb[0].mxu0
    %v1938 = vadd.f32 %v1696, %v1937
    %v1939 = vpop.f32.mrb[0].mxu0
    %v1940 = vadd.f32 %v1700, %v1939
    %v1941 = vpop.f32.mrb[0].mxu0
    %v1942 = vadd.f32 %v1696, %v1941
    %v1943 = vpop.f32.mrb[0].mxu0
    %v1944 = vadd.f32 %v1700, %v1943
    %1945 = vmatprep.mubr.bf16.mxu0 %v1654
    %1946 = vmatmul.mubr.bf16.gmra.mrb[0].mxu0 %v1653
    %v1947 = vpop.f32.mrb[0].mxu0
    %v1948 = vadd.f32 %v1696, %v1947
    %v1949 = vpop.f32.mrb[0].mxu0
    %v1950 = vadd.f32 %v1700, %v1949
    %v1951 = vpop.f32.mrb[0].mxu0
    %v1952 = vadd.f32 %v1696, %v1951
    %v1953 = vpop.f32.mrb[0].mxu0
    %v1954 = vadd.f32 %v1700, %v1953
    %1955 = vmatprep.mubr.bf16.mxu0 %v1656
    %1956 = vmatmul.mubr.bf16.gmra.mrb[0].mxu0 %v1655
    %v1957 = vpop.f32.mrb[0].mxu0
    %v1958 = vadd.f32 %v1696, %v1957
    %v1959 = vpop.f32.mrb[0].mxu0
    %v1960 = vadd.f32 %v1700, %v1959
    %v1961 = vpop.f32.mrb[0].mxu0
    %v1962 = vadd.f32 %v1696, %v1961
    %v1963 = vpop.f32.mrb[0].mxu0
    %v1964 = vadd.f32 %v1700, %v1963
    %1965 = vmatprep.mubr.bf16.mxu0 %v1658
    %1966 = vmatmul.mubr.bf16.gmra.mrb[0].mxu0 %v1657
    %v1967 = vpop.f32.mrb[0].mxu0
    %v1968 = vadd.f32 %v1696, %v1967
    %v1969 = vpop.f32.mrb[0].mxu0
    %v1970 = vadd.f32 %v1700, %v1969
    %v1971 = vpop.f32.mrb[0].mxu0
    %v1972 = vadd.f32 %v1696, %v1971
    %v1973 = vpop.f32.mrb[0].mxu0
    %v1974 = vadd.f32 %v1700, %v1973
    %1975 = vdwg.mxu0
    %v1976 = vmax.f32 %v1898, 0.0
    %v1977 = vmax.f32 %v1900, 0.0
    %v1978 = vmax.f32 %v1902, 0.0
    %v1979 = vmax.f32 %v1904, 0.0
    %v1980 = vmax.f32 %v1908, 0.0
    %v1981 = vmax.f32 %v1910, 0.0
    %v1982 = vmax.f32 %v1912, 0.0
    %v1983 = vmax.f32 %v1914, 0.0
    %v1984 = vmax.f32 %v1918, 0.0
    %v1985 = vmax.f32 %v1920, 0.0
    %v1986 = vmax.f32 %v1922, 0.0
    %v1987 = vmax.f32 %v1924, 0.0
    %v1988 = vmax.f32 %v1928, 0.0
    %v1989 = vmax.f32 %v1930, 0.0
    %v1990 = vmax.f32 %v1932, 0.0
    %v1991 = vmax.f32 %v1934, 0.0
    %v1992 = vmax.f32 %v1938, 0.0
    %v1993 = vmax.f32 %v1940, 0.0
    %v1994 = vmax.f32 %v1942, 0.0
    %v1995 = vmax.f32 %v1944, 0.0
    %v1996 = vmax.f32 %v1948, 0.0
    %v1997 = vmax.f32 %v1950, 0.0
    %v1998 = vmax.f32 %v1952, 0.0
    %v1999 = vmax.f32 %v1954, 0.0
    %v2000 = vmax.f32 %v1958, 0.0
    %v2001 = vmax.f32 %v1960, 0.0
    %v2002 = vmax.f32 %v1962, 0.0
    %v2003 = vmax.f32 %v1964, 0.0
    %v2004 = vmax.f32 %v1968, 0.0
    %v2005 = vmax.f32 %v1970, 0.0
    %v2006 = vmax.f32 %v1972, 0.0
    %v2007 = vmax.f32 %v1974, 0.0
    %v2008 = vld [vmem:[%s11] sm:$0x3]
    %v2010 = vlaneseq
    %v2011 = vshrl.u32 %v2010, 7
    %v2012 = vsub.s32 0, %v2011
    %v2013 = vrot.slane %v2008, %v2012
    %v2014 = vlaneseq
    %v2015 = vshrl.u32 %v2014, 7
    %v2016 = vsub.s32 1, %v2015
    %v2017 = vrot.slane %v2008, %v2016
    %v2020 = vmul.f32 %v1262, %v2013
    %v2021 = vmul.f32 %v1263, %v2017
    %v2022 = vmul.f32 %v1264, %v2013
    %v2023 = vmul.f32 %v1265, %v2017
    %v2024 = vmul.f32 %v1266, %v2013
    %v2025 = vmul.f32 %v1267, %v2017
    %v2026 = vmul.f32 %v1268, %v2013
    %v2027 = vmul.f32 %v1269, %v2017
    %v2028 = vmul.f32 %v1270, %v2013
    %v2029 = vmul.f32 %v1271, %v2017
    %v2030 = vmul.f32 %v1272, %v2013
    %v2031 = vmul.f32 %v1273, %v2017
    %v2032 = vmul.f32 %v1274, %v2013
    %v2033 = vmul.f32 %v1275, %v2017
    %v2034 = vmul.f32 %v1276, %v2013
    %v2035 = vmul.f32 %v1277, %v2017
    %v2036 = vmul.f32 %v1278, %v2013
    %v2037 = vmul.f32 %v1279, %v2017
    %v2038 = vmul.f32 %v1280, %v2013
    %v2039 = vmul.f32 %v1281, %v2017
    %v2040 = vmul.f32 %v1282, %v2013
    %v2041 = vmul.f32 %v1283, %v2017
    %v2042 = vmul.f32 %v1284, %v2013
    %v2043 = vmul.f32 %v1285, %v2017
    %v2044 = vmul.f32 %v1286, %v2013
    %v2045 = vmul.f32 %v1287, %v2017
    %v2046 = vmul.f32 %v1288, %v2013
    %v2047 = vmul.f32 %v1289, %v2017
    %v2048 = vmul.f32 %v1290, %v2013
    %v2049 = vmul.f32 %v1291, %v2017
    %v2050 = vmul.f32 %v1292, %v2013
    %v2051 = vmul.f32 %v1293, %v2017
    %v2052 = vadd.f32 %v2020, %v2021
    %2053 = vadd.xlane.f32.xlu0 %v2052
    %v2054 = vpop.xlane.xlu0 %2053
    %v2055 = vadd.f32 %v2022, %v2023
    %2056 = vadd.xlane.f32.xlu0 %v2055
    %v2057 = vpop.xlane.xlu0 %2056
    %v2058 = vadd.f32 %v2024, %v2025
    %2059 = vadd.xlane.f32.xlu0 %v2058
    %v2060 = vpop.xlane.xlu0 %2059
    %v2061 = vadd.f32 %v2026, %v2027
    %2062 = vadd.xlane.f32.xlu0 %v2061
    %v2063 = vpop.xlane.xlu0 %2062
    %v2064 = vadd.f32 %v2028, %v2029
    %2065 = vadd.xlane.f32.xlu0 %v2064
    %v2066 = vpop.xlane.xlu0 %2065
    %v2067 = vadd.f32 %v2030, %v2031
    %2068 = vadd.xlane.f32.xlu0 %v2067
    %v2069 = vpop.xlane.xlu0 %2068
    %v2070 = vadd.f32 %v2032, %v2033
    %2071 = vadd.xlane.f32.xlu0 %v2070
    %v2072 = vpop.xlane.xlu0 %2071
    %v2073 = vadd.f32 %v2034, %v2035
    %2074 = vadd.xlane.f32.xlu0 %v2073
    %v2075 = vpop.xlane.xlu0 %2074
    %v2076 = vadd.f32 %v2036, %v2037
    %2077 = vadd.xlane.f32.xlu0 %v2076
    %v2078 = vpop.xlane.xlu0 %2077
    %v2079 = vadd.f32 %v2038, %v2039
    %2080 = vadd.xlane.f32.xlu0 %v2079
    %v2081 = vpop.xlane.xlu0 %2080
    %v2082 = vadd.f32 %v2040, %v2041
    %2083 = vadd.xlane.f32.xlu0 %v2082
    %v2084 = vpop.xlane.xlu0 %2083
    %v2085 = vadd.f32 %v2042, %v2043
    %2086 = vadd.xlane.f32.xlu0 %v2085
    %v2087 = vpop.xlane.xlu0 %2086
    %v2088 = vadd.f32 %v2044, %v2045
    %2089 = vadd.xlane.f32.xlu0 %v2088
    %v2090 = vpop.xlane.xlu0 %2089
    %v2091 = vadd.f32 %v2046, %v2047
    %2092 = vadd.xlane.f32.xlu0 %v2091
    %v2093 = vpop.xlane.xlu0 %2092
    %v2094 = vadd.f32 %v2048, %v2049
    %2095 = vadd.xlane.f32.xlu0 %v2094
    %v2096 = vpop.xlane.xlu0 %2095
    %v2097 = vadd.f32 %v2050, %v2051
    %2098 = vadd.xlane.f32.xlu0 %v2097
    %v2099 = vpop.xlane.xlu0 %2098
    %v2100 = vld [vmem:[%s12] sm:$0x3]
    %v2102 = vlaneseq
    %v2103 = vshrl.u32 %v2102, 7
    %v2104 = vsub.s32 0, %v2103
    %v2105 = vrot.slane %v2100, %v2104
    %v2106 = vlaneseq
    %v2107 = vshrl.u32 %v2106, 7
    %v2108 = vsub.s32 1, %v2107
    %v2109 = vrot.slane %v2100, %v2108
    %v2112 = vmul.f32 %v1976, %v2105
    %v2113 = vmul.f32 %v1977, %v2109
    %v2114 = vmul.f32 %v1978, %v2105
    %v2115 = vmul.f32 %v1979, %v2109
    %v2116 = vmul.f32 %v1980, %v2105
    %v2117 = vmul.f32 %v1981, %v2109
    %v2118 = vmul.f32 %v1982, %v2105
    %v2119 = vmul.f32 %v1983, %v2109
    %v2120 = vmul.f32 %v1984, %v2105
    %v2121 = vmul.f32 %v1985, %v2109
    %v2122 = vmul.f32 %v1986, %v2105
    %v2123 = vmul.f32 %v1987, %v2109
    %v2124 = vmul.f32 %v1988, %v2105
    %v2125 = vmul.f32 %v1989, %v2109
    %v2126 = vmul.f32 %v1990, %v2105
    %v2127 = vmul.f32 %v1991, %v2109
    %v2128 = vmul.f32 %v1992, %v2105
    %v2129 = vmul.f32 %v1993, %v2109
    %v2130 = vmul.f32 %v1994, %v2105
    %v2131 = vmul.f32 %v1995, %v2109
    %v2132 = vmul.f32 %v1996, %v2105
    %v2133 = vmul.f32 %v1997, %v2109
    %v2134 = vmul.f32 %v1998, %v2105
    %v2135 = vmul.f32 %v1999, %v2109
    %v2136 = vmul.f32 %v2000, %v2105
    %v2137 = vmul.f32 %v2001, %v2109
    %v2138 = vmul.f32 %v2002, %v2105
    %v2139 = vmul.f32 %v2003, %v2109
    %v2140 = vmul.f32 %v2004, %v2105
    %v2141 = vmul.f32 %v2005, %v2109
    %v2142 = vmul.f32 %v2006, %v2105
    %v2143 = vmul.f32 %v2007, %v2109
    %v2144 = vadd.f32 %v2112, %v2113
    %2145 = vadd.xlane.f32.xlu0 %v2144
    %v2146 = vpop.xlane.xlu0 %2145
    %v2147 = vadd.f32 %v2114, %v2115
    %2148 = vadd.xlane.f32.xlu0 %v2147
    %v2149 = vpop.xlane.xlu0 %2148
    %v2150 = vadd.f32 %v2116, %v2117
    %2151 = vadd.xlane.f32.xlu0 %v2150
    %v2152 = vpop.xlane.xlu0 %2151
    %v2153 = vadd.f32 %v2118, %v2119
    %2154 = vadd.xlane.f32.xlu0 %v2153
    %v2155 = vpop.xlane.xlu0 %2154
    %v2156 = vadd.f32 %v2120, %v2121
    %2157 = vadd.xlane.f32.xlu0 %v2156
    %v2158 = vpop.xlane.xlu0 %2157
    %v2159 = vadd.f32 %v2122, %v2123
    %2160 = vadd.xlane.f32.xlu0 %v2159
    %v2161 = vpop.xlane.xlu0 %2160
    %v2162 = vadd.f32 %v2124, %v2125
    %2163 = vadd.xlane.f32.xlu0 %v2162
    %v2164 = vpop.xlane.xlu0 %2163
    %v2165 = vadd.f32 %v2126, %v2127
    %2166 = vadd.xlane.f32.xlu0 %v2165
    %v2167 = vpop.xlane.xlu0 %2166
    %v2168 = vadd.f32 %v2128, %v2129
    %2169 = vadd.xlane.f32.xlu0 %v2168
    %v2170 = vpop.xlane.xlu0 %2169
    %v2171 = vadd.f32 %v2130, %v2131
    %2172 = vadd.xlane.f32.xlu0 %v2171
    %v2173 = vpop.xlane.xlu0 %2172
    %v2174 = vadd.f32 %v2132, %v2133
    %2175 = vadd.xlane.f32.xlu0 %v2174
    %v2176 = vpop.xlane.xlu0 %2175
    %v2177 = vadd.f32 %v2134, %v2135
    %2178 = vadd.xlane.f32.xlu0 %v2177
    %v2179 = vpop.xlane.xlu0 %2178
    %v2180 = vadd.f32 %v2136, %v2137
    %2181 = vadd.xlane.f32.xlu0 %v2180
    %v2182 = vpop.xlane.xlu0 %2181
    %v2183 = vadd.f32 %v2138, %v2139
    %2184 = vadd.xlane.f32.xlu0 %v2183
    %v2185 = vpop.xlane.xlu0 %2184
    %v2186 = vadd.f32 %v2140, %v2141
    %2187 = vadd.xlane.f32.xlu0 %v2186
    %v2188 = vpop.xlane.xlu0 %2187
    %v2189 = vadd.f32 %v2142, %v2143
    %2190 = vadd.xlane.f32.xlu0 %v2189
    %v2191 = vpop.xlane.xlu0 %2190
    %vm2192 = vcmask 7168
    %v2193 = vsel %vm2192, %v2054, %v2146
    %v2194 = vsel %vm2192, %v2057, %v2149
    %v2195 = vsel %vm2192, %v2060, %v2152
    %v2196 = vsel %vm2192, %v2063, %v2155
    %v2197 = vsel %vm2192, %v2066, %v2158
    %v2198 = vsel %vm2192, %v2069, %v2161
    %v2199 = vsel %vm2192, %v2072, %v2164
    %v2200 = vsel %vm2192, %v2075, %v2167
    %v2201 = vsel %vm2192, %v2078, %v2170
    %v2202 = vsel %vm2192, %v2081, %v2173
    %v2203 = vsel %vm2192, %v2084, %v2176
    %v2204 = vsel %vm2192, %v2087, %v2179
    %v2205 = vsel %vm2192, %v2090, %v2182
    %v2206 = vsel %vm2192, %v2093, %v2185
    %v2207 = vsel %vm2192, %v2096, %v2188
    %v2208 = vsel %vm2192, %v2099, %v2191
    %v2209 = vld [vmem:[%s13] sm:$0x1]
    %v2211 = vlaneseq
    %v2212 = vshrl.u32 %v2211, 7
    %v2213 = vsub.s32 0, %v2212
    %v2214 = vrot.slane %v2209, %v2213
    %v2216 = vadd.f32 %v2193, %v2214
    %v2217 = vadd.f32 %v2194, %v2214
    %v2218 = vadd.f32 %v2195, %v2214
    %v2219 = vadd.f32 %v2196, %v2214
    %v2220 = vadd.f32 %v2197, %v2214
    %v2221 = vadd.f32 %v2198, %v2214
    %v2222 = vadd.f32 %v2199, %v2214
    %v2223 = vadd.f32 %v2200, %v2214
    %v2224 = vadd.f32 %v2201, %v2214
    %v2225 = vadd.f32 %v2202, %v2214
    %v2226 = vadd.f32 %v2203, %v2214
    %v2227 = vadd.f32 %v2204, %v2214
    %v2228 = vadd.f32 %v2205, %v2214
    %v2229 = vadd.f32 %v2206, %v2214
    %v2230 = vadd.f32 %v2207, %v2214
    %v2231 = vadd.f32 %v2208, %v2214
    %vm2232 = vcmask 15360
    %2233 = vst.msk [vmem:[#allocation9] sm:$0xff] %vm2232, %v2216
    %2234 = vst.msk [vmem:[#allocation9 + $0x8] sm:$0xff] %vm2232, %v2217
    %2235 = vst.msk [vmem:[#allocation9 + $0x10] sm:$0xff] %vm2232, %v2218
    %2236 = vst.msk [vmem:[#allocation9 + $0x18] sm:$0xff] %vm2232, %v2219
    %2237 = vst.msk [vmem:[#allocation9 + $0x20] sm:$0xff] %vm2232, %v2220
    %2238 = vst.msk [vmem:[#allocation9 + $0x28] sm:$0xff] %vm2232, %v2221
    %2239 = vst.msk [vmem:[#allocation9 + $0x30] sm:$0xff] %vm2232, %v2222
    %2240 = vst.msk [vmem:[#allocation9 + $0x38] sm:$0xff] %vm2232, %v2223
    %2241 = vst.msk [vmem:[#allocation9 + $0x40] sm:$0xff] %vm2232, %v2224
    %2242 = vst.msk [vmem:[#allocation9 + $0x48] sm:$0xff] %vm2232, %v2225
    %2243 = vst.msk [vmem:[#allocation9 + $0x50] sm:$0xff] %vm2232, %v2226
    %2244 = vst.msk [vmem:[#allocation9 + $0x58] sm:$0xff] %vm2232, %v2227
    %2245 = vst.msk [vmem:[#allocation9 + $0x60] sm:$0xff] %vm2232, %v2228
    %2246 = vst.msk [vmem:[#allocation9 + $0x68] sm:$0xff] %vm2232, %v2229
    %2247 = vst.msk [vmem:[#allocation9 + $0x70] sm:$0xff] %vm2232, %v2230
    %2248 = vst.msk [vmem:[#allocation9 + $0x78] sm:$0xff] %vm2232, %v2231
    // Predicated region
    $region74: #{critic_forward.1} parent=1 // pred_check
      _
    $region75: #{critic_forward.1} parent=1 // pred_check_branch
      %2250 = sbr.rel (0) target = $region77
    $region76: #{critic_forward.1} parent=1 // pred_region
      // Predicated region
      $region78: #{critic_forward.1} parent=76 // pred_check
        _
      $region79: #{critic_forward.1} parent=76 // pred_check_branch
        %2252 = sbr.rel (0) target = $region81
      $region80: #{critic_forward.1} parent=76 // pred_region
        // Predicated region
        $region82: #{critic_forward.1} parent=80 // pred_check
          _
        $region83: #{critic_forward.1} parent=80 // pred_check_branch
          %2254 = sbr.rel (0) target = $region85
        $region84: #{critic_forward.1} parent=80 // pred_region
          // Predicated region
          $region97: #{critic_forward.1} parent=84 // pred_check
            _
          $region98: #{critic_forward.1} parent=84 // pred_check_branch
            %2269 = sbr.rel (0) target = $region100
          $region99: #{critic_forward.1} parent=84 // pred_region
            loop: start=0, step=1, limit=1
            $region101: #{critic_forward.1} parent=99 // loop_pre_header
              _
            $region102: #{critic_forward.1} parent=99 // loop_header
              %s2271 = sphi 0, %s2275
              %p2272 = scmp.ge.s32.totalorder %s2271, 1
              %s2276 = sphi [#allocation9], [#allocation9]
              %s2277 = sphi %s14, %s14
            $region103: #{critic_forward.1} parent=99 // loop_header_branch
              %2274 = sbr.rel (%p2272) target = $region107
            $region104: #{critic_forward.1} parent=99 // loop_body
              %v2278 = vld [vmem:[%s2276] sm:$0xff]
              %2279 = vst [vmem:[%s2277] sm:$0xff] %v2278
            $region105: #{critic_forward.1} parent=99 // loop_footer
              %s2275 = sadd.s32 1, %s2271
            $region106: #{critic_forward.1} parent=99 // loop_footer_branch
              %2270 = sbr.rel target = $region102
            $region107: #{critic_forward.1} parent=99 // loop_exit
              _
          $region100: #{critic_forward.1} parent=84 // pred_fallthru
            _
          // Predicated region
          $region108: #{critic_forward.1} parent=84 // pred_check
            _
          $region109: #{critic_forward.1} parent=84 // pred_check_branch
            %2281 = sbr.rel target = $region111
          $region110: #{critic_forward.1} parent=84 // pred_region
            _
          $region111: #{critic_forward.1} parent=84 // pred_fallthru
            _
        $region85: #{critic_forward.1} parent=80 // pred_fallthru
          _
        // Predicated region
        $region86: #{critic_forward.1} parent=80 // pred_check
          _
        $region87: #{critic_forward.1} parent=80 // pred_check_branch
          %2256 = sbr.rel target = $region89
        $region88: #{critic_forward.1} parent=80 // pred_region
          loop: start=0, step=1, limit=1
          $region90: #{critic_forward.1} parent=88 // loop_pre_header
            _
          $region91: #{critic_forward.1} parent=88 // loop_header
            %s2259 = sphi 0, %s2263
            %p2260 = scmp.ge.s32.totalorder %s2259, 1
            %s2264 = sphi [#allocation9], [#allocation9]
            %s2265 = sphi %s14, %s14
          $region92: #{critic_forward.1} parent=88 // loop_header_branch
            %2262 = sbr.rel (%p2260) target = $region96
          $region93: #{critic_forward.1} parent=88 // loop_body
            %v2266 = vld [vmem:[%s2264] sm:$0xff]
            %2267 = vst [vmem:[%s2265] sm:$0xff] %v2266
          $region94: #{critic_forward.1} parent=88 // loop_footer
            %s2263 = sadd.s32 1, %s2259
          $region95: #{critic_forward.1} parent=88 // loop_footer_branch
            %2258 = sbr.rel target = $region91
          $region96: #{critic_forward.1} parent=88 // loop_exit
            _
        $region89: #{critic_forward.1} parent=80 // pred_fallthru
          _
      $region81: #{critic_forward.1} parent=76 // pred_fallthru
        _
      %2282 = vnop
    $region77: #{critic_forward.1} parent=1 // pred_fallthru
      _
    // Predicated region
    $region112: #{critic_forward.1} parent=1 // pred_check
      _
    $region113: #{critic_forward.1} parent=1 // pred_check_branch
      %2284 = sbr.rel (0) target = $region115
    $region114: #{critic_forward.1} parent=1 // pred_region
      _
    $region115: #{critic_forward.1} parent=1 // pred_fallthru
      _
    %2285 = vsyncpa [#allocation3], 1
    %2286 = vsyncpa [#allocation5], 1
    %2287 = vsyncpa [#allocation8], 1

</llo_original>
